<compile_context>
chip_gen: v7x
topology: tpu7x:2x2x1
jax: 0.10.0
libtpu: 0.0.40
codegen_flags: <defaults>
</compile_context>

<pallas_src>
import functools

import jax
import jax.numpy as jnp
from jax import lax
from jax.experimental import pallas as pl
from jax.experimental.pallas import tpu as pltpu

KSIZE = 7
PAD = 3


def _spatial_attention_kernel(w_ref, m_ref, x_ref, o_ref,
                              sum_ref, max_ref, pad_ref, *, C, W):
    # w_ref   : SMEM (2*7*7,) f32        conv weights, flattened [cin, kh, kw]
    # m_ref   : VMEM (7, H*W) f32        per-kw column-validity masks (0/1)
    # x_ref   : VMEM (Nb, Cb, H*W)       lane-dense input block
    # o_ref   : VMEM (Nb, 1, H*W)        sigmoid(conv) output block
    # sum_ref : VMEM (Nb, H*W) f32       running channel sum (across c grid axis)
    # max_ref : VMEM (Nb, H*W) f32       running channel max
    # pad_ref : VMEM (2, Nb, TOT) f32    flat H-padded avg/max maps with lane halos
    nb, cb, HW = x_ref.shape
    TOT = pad_ref.shape[-1]
    OFF = PAD + PAD * W                       # interior start inside pad_ref
    ci = pl.program_id(1)

    # ---- per-block channel reduction: static (fully unrolled) loop, Cb <= 8 ----
    x0 = x_ref[:, 0, :].astype(jnp.float32)   # (Nb, HW), 256+ lanes dense
    csum, cmax = x0, x0
    for c in range(1, cb):
        xc = x_ref[:, c, :].astype(jnp.float32)
        csum = csum + xc
        cmax = jnp.maximum(cmax, xc)

    @pl.when(ci == 0)
    def _init():
        sum_ref[...] = csum
        max_ref[...] = cmax

    @pl.when(ci != 0)
    def _accum():
        sum_ref[...] = sum_ref[...] + csum
        max_ref[...] = jnp.maximum(max_ref[...], cmax)

    # ---- last channel step: pad (H only) -> 7x7 conv -> sigmoid -> dense store ----
    @pl.when(ci == pl.num_programs(1) - 1)
    def _tail():
        avg = sum_ref[...] * (1.0 / C)        # (Nb, HW) f32
        mx = max_ref[...]

        # zero only the halo strips; the interior is fully overwritten below
        pad_ref[:, :, 0:OFF] = jnp.zeros((2, nb, OFF), jnp.float32)
        pad_ref[:, :, OFF + HW:TOT] = jnp.zeros((2, nb, TOT - OFF - HW), jnp.float32)
        pad_ref[0, :, OFF:OFF + HW] = avg
        pad_ref[1, :, OFF:OFF + HW] = mx

        e0 = pad_ref[0]                       # (Nb, TOT) avg map, padded+halo
        e1 = pad_ref[1]                       # (Nb, TOT) max map, padded+halo

        acc0 = jnp.zeros((nb, HW), jnp.float32)
        acc1 = jnp.zeros((nb, HW), jnp.float32)
        for kw in range(KSIZE):
            dw = kw - PAD
            # per-channel partial accumulators (short dependency chains)
            p0 = jnp.zeros((nb, HW), jnp.float32)
            p1 = jnp.zeros((nb, HW), jnp.float32)
            for kh in range(KSIZE):
                s = PAD + kh * W + dw         # static lane-offset slice start
                p0 = p0 + e0[:, s:s + HW] * w_ref[kh * KSIZE + kw]
                p1 = p1 + e1[:, s:s + HW] * w_ref[KSIZE * KSIZE + kh * KSIZE + kw]
            psum = p0 + p1
            if dw != 0:                       # column-edge mask (all-ones for dw==0)
                psum = psum * m_ref[kw:kw + 1, :]
            if kw % 2 == 0:
                acc0 = acc0 + psum
            else:
                acc1 = acc1 + psum

        res = jax.nn.sigmoid(acc0 + acc1)
        o_ref[...] = res[:, None, :].astype(o_ref.dtype)   # one dense store


def _largest_divisor(n, cap):
    cap = max(1, min(n, cap))
    for d in range(cap, 0, -1):
        if n % d == 0:
            return d
    return 1


def _pick_channel_block(C, cap=32):
    # Second-minor block dim must be a multiple of 8 or equal the full extent.
    if C <= 8:
        return C
    best = None
    d = 8
    while d <= min(C, cap):
        if C % d == 0:
            best = d
        d += 8
    return best if best is not None else C


def _pick_batch_block(N, Cb, HW, TOT, itemsize, vmem_limit, max_batch_block=8):
    # v7x: keep the parallel batch axis >= 2 grid steps so both TensorCores work.
    cap = max_batch_block if N < 2 else min(max_batch_block, max(1, N // 2))
    nb = _largest_divisor(N, cap)
    budget = int(0.7 * vmem_limit)
    while nb > 1:
        est = (2 * nb * Cb * HW * itemsize      # x block, double-buffered
               + 2 * nb * HW * itemsize         # out block, double-buffered
               + 2 * KSIZE * HW * 4             # masks
               + 2 * nb * HW * 4                # sum/max scratch
               + 2 * nb * TOT * 4               # padded-map scratch
               + 8 * nb * HW * 4)               # headroom for live accumulators
        if est <= budget:
            break
        nb = _largest_divisor(N, nb - 1)
    return nb


def spatial_attention(x, conv_weight, *, max_batch_block=8,
                      vmem_limit_bytes=32 * 1024 * 1024):
    """x: (N, C, H, W); conv_weight: (1, 2, 7, 7). Returns (N, 1, H, W)."""
    N, C, H, W = x.shape
    HW = H * W
    TOT = HW + 2 * PAD * W + 2 * PAD            # flat H-padded length + lane halos

    Cb = _pick_channel_block(C)
    Nb = _pick_batch_block(N, Cb, HW, TOT, x.dtype.itemsize,
                           vmem_limit_bytes, max_batch_block)

    # Lane-dense views: fold (H, W) -> H*W (free, contiguous reshape).
    x_flat = x.reshape(N, C, HW)
    w_flat = conv_weight.reshape(-1).astype(jnp.float32)      # (2*7*7,)

    # Per-kw column-validity masks in the flat spatial layout (tiny, built once).
    col = jnp.arange(HW, dtype=jnp.int32) % W
    masks = jnp.stack(
        [((col + (kw - PAD) >= 0) & (col + (kw - PAD) < W)).astype(jnp.float32)
         for kw in range(KSIZE)], axis=0)                      # (7, HW)

    kernel = functools.partial(_spatial_attention_kernel, C=C, W=W)

    out_flat = pl.pallas_call(
        kernel,
        out_shape=jax.ShapeDtypeStruct((N, 1, HW), x.dtype),
        grid=(N // Nb, C // Cb),
        in_specs=[
            pl.BlockSpec(memory_space=pltpu.SMEM),                     # weights
            pl.BlockSpec((KSIZE, HW), lambda b, c: (0, 0)),            # kw masks
            pl.BlockSpec((Nb, Cb, HW), lambda b, c: (b, c, 0)),        # x block
        ],
        out_specs=pl.BlockSpec((Nb, 1, HW), lambda b, c: (b, 0, 0)),
        scratch_shapes=[
            pltpu.VMEM((Nb, HW), jnp.float32),        # running channel sum
            pltpu.VMEM((Nb, HW), jnp.float32),        # running channel max
            pltpu.VMEM((2, Nb, TOT), jnp.float32),    # flat padded avg/max maps
        ],
        compiler_params=pltpu.CompilerParams(
            dimension_semantics=("parallel", "arbitrary"),
            vmem_limit_bytes=vmem_limit_bytes),
    )(w_flat, masks, x_flat)

    # Free (contiguous) reshape back to the PyTorch layout.
    return out_flat.reshape(N, 1, H, W)

    # TODO(synk): for large H*W on v6e/v7x, fold the kw taps into a banded MXU
    # matmul instead of the VPU tap loop (not worth it at 16x16).


def _reference(x, conv_weight):
    avg = jnp.mean(x, axis=1, keepdims=True)
    mx = jnp.max(x, axis=1, keepdims=True)
    cat = jnp.concatenate([avg, mx], axis=1)                   # (N, 2, H, W)
    y = lax.conv_general_dilated(
        cat, conv_weight, window_strides=(1, 1),
        padding=((PAD, PAD), (PAD, PAD)),
        dimension_numbers=("NCHW", "OIHW", "NCHW"))
    return jax.nn.sigmoid(y)


if __name__ == "__main__":
    key = jax.random.PRNGKey(0)
    kx, kw_key = jax.random.split(key)

    N, C, H, W = 2, 4, 16, 16
    x = jax.random.normal(kx, (N, C, H, W), dtype=jnp.float32)

    # Deterministic conv weight init (kaiming-uniform-like scale), shape (1, 2, 7, 7).
    fan_in = 2 * KSIZE * KSIZE
    bound = 1.0 / (fan_in ** 0.5)
    conv_weight = jax.random.uniform(
        kw_key, (1, 2, KSIZE, KSIZE), minval=-bound, maxval=bound, dtype=jnp.float32)

    out = spatial_attention(x, conv_weight)
    out = jax.block_until_ready(out)

    ref = _reference(x, conv_weight)
    assert out.shape == (N, 1, H, W)
    err = float(jnp.max(jnp.abs(out - ref)))
    assert err < 1e-5, err

    print("KERNEL_OK")
</pallas_src>

<mosaic_0001>
module attributes {stable_mosaic.version = 11 : i64} {
  func.func @_spatial_attention_kernel(%arg0: i32, %arg1: i32, %arg2: memref<98xf32, #tpu.memory_space<smem>>, %arg3: memref<7x256xf32, #tpu.memory_space<vmem>>, %arg4: memref<1x4x256xf32, #tpu.memory_space<vmem>>, %arg5: memref<1x1x256xf32, #tpu.memory_space<vmem>>, %arg6: memref<1x256xf32, #tpu.memory_space<vmem>>, %arg7: memref<1x256xf32, #tpu.memory_space<vmem>>, %arg8: memref<2x1x358xf32, #tpu.memory_space<vmem>>) attributes {dimension_semantics = [#tpu.dimension_semantics<parallel>, #tpu.dimension_semantics<arbitrary>], iteration_bounds = array<i64: 2, 1>, scalar_prefetch = 0 : i64, scratch_operands = 3 : i64, tpu.core_type = #tpu.core_type<tc>, window_params = [{transform_indices = @transform_0, window_bounds = array<i64: 98>}, {pipeline_mode = #tpu.pipeline_mode<synchronous>, transform_indices = @transform_1, window_bounds = array<i64: 7, 256>}, {transform_indices = @transform_2, window_bounds = array<i64: 1, 4, 256>}, {transform_indices = @transform_3, window_bounds = array<i64: 1, 1, 256>}]} {
    %c0 = arith.constant 0 : index
    %c0_0 = arith.constant 0 : index
    %c0_1 = arith.constant 0 : index
    %0 = vector.load %arg4[%c0, %c0_0, %c0_1] : memref<1x4x256xf32, #tpu.memory_space<vmem>>, vector<1x1x256xf32>
    %1 = vector.shape_cast %0 : vector<1x1x256xf32> to vector<1x256xf32>
    %c0_2 = arith.constant 0 : index
    %c1 = arith.constant 1 : index
    %c0_3 = arith.constant 0 : index
    %2 = vector.load %arg4[%c0_2, %c1, %c0_3] : memref<1x4x256xf32, #tpu.memory_space<vmem>>, vector<1x1x256xf32>
    %3 = vector.shape_cast %2 : vector<1x1x256xf32> to vector<1x256xf32>
    %4 = arith.addf %1, %3 : vector<1x256xf32>
    %5 = arith.maximumf %1, %3 : vector<1x256xf32>
    %c0_4 = arith.constant 0 : index
    %c2 = arith.constant 2 : index
    %c0_5 = arith.constant 0 : index
    %6 = vector.load %arg4[%c0_4, %c2, %c0_5] : memref<1x4x256xf32, #tpu.memory_space<vmem>>, vector<1x1x256xf32>
    %7 = vector.shape_cast %6 : vector<1x1x256xf32> to vector<1x256xf32>
    %8 = arith.addf %4, %7 : vector<1x256xf32>
    %9 = arith.maximumf %5, %7 : vector<1x256xf32>
    %c0_6 = arith.constant 0 : index
    %c3 = arith.constant 3 : index
    %c0_7 = arith.constant 0 : index
    %10 = vector.load %arg4[%c0_6, %c3, %c0_7] : memref<1x4x256xf32, #tpu.memory_space<vmem>>, vector<1x1x256xf32>
    %11 = vector.shape_cast %10 : vector<1x1x256xf32> to vector<1x256xf32>
    %12 = arith.addf %8, %11 : vector<1x256xf32>
    %13 = arith.maximumf %9, %11 : vector<1x256xf32>
    %c0_i32 = arith.constant 0 : i32
    %14 = arith.cmpi eq, %arg1, %c0_i32 : i32
    %15 = arith.extui %14 : i1 to i32
    %c0_i32_8 = arith.constant 0 : i32
    %16 = arith.cmpi ne, %15, %c0_i32_8 : i32
    scf.if %16 {
      %c0_13 = arith.constant 0 : index
      %c0_14 = arith.constant 0 : index
      %23 = vector.load %arg6[%c0_13, %c0_14] : memref<1x256xf32, #tpu.memory_space<vmem>>, vector<1x256xf32>
      tpu.vector_store %arg6[%c0_13, %c0_14], %12 {strides = array<i32>} : memref<1x256xf32, #tpu.memory_space<vmem>>, vector<1x256xf32>,
      %c0_15 = arith.constant 0 : index
      %c0_16 = arith.constant 0 : index
      %24 = vector.load %arg7[%c0_15, %c0_16] : memref<1x256xf32, #tpu.memory_space<vmem>>, vector<1x256xf32>
      tpu.vector_store %arg7[%c0_15, %c0_16], %13 {strides = array<i32>} : memref<1x256xf32, #tpu.memory_space<vmem>>, vector<1x256xf32>,
    } else {
    }
    %c0_i32_9 = arith.constant 0 : i32
    %17 = arith.cmpi ne, %arg1, %c0_i32_9 : i32
    %18 = arith.extui %17 : i1 to i32
    %c0_i32_10 = arith.constant 0 : i32
    %19 = arith.cmpi ne, %18, %c0_i32_10 : i32
    scf.if %19 {
      %c0_13 = arith.constant 0 : index
      %c0_14 = arith.constant 0 : index
      %23 = vector.load %arg6[%c0_13, %c0_14] : memref<1x256xf32, #tpu.memory_space<vmem>>, vector<1x256xf32>
      %24 = arith.addf %23, %12 : vector<1x256xf32>
      %c0_15 = arith.constant 0 : index
      %c0_16 = arith.constant 0 : index
      %25 = vector.load %arg6[%c0_15, %c0_16] : memref<1x256xf32, #tpu.memory_space<vmem>>, vector<1x256xf32>
      tpu.vector_store %arg6[%c0_15, %c0_16], %24 {strides = array<i32>} : memref<1x256xf32, #tpu.memory_space<vmem>>, vector<1x256xf32>,
      %c0_17 = arith.constant 0 : index
      %c0_18 = arith.constant 0 : index
      %26 = vector.load %arg7[%c0_17, %c0_18] : memref<1x256xf32, #tpu.memory_space<vmem>>, vector<1x256xf32>
      %27 = arith.maximumf %26, %13 : vector<1x256xf32>
      %c0_19 = arith.constant 0 : index
      %c0_20 = arith.constant 0 : index
      %28 = vector.load %arg7[%c0_19, %c0_20] : memref<1x256xf32, #tpu.memory_space<vmem>>, vector<1x256xf32>
      tpu.vector_store %arg7[%c0_19, %c0_20], %27 {strides = array<i32>} : memref<1x256xf32, #tpu.memory_space<vmem>>, vector<1x256xf32>,
    } else {
    }
    %c0_i32_11 = arith.constant 0 : i32
    %20 = arith.cmpi eq, %arg1, %c0_i32_11 : i32
    %21 = arith.extui %20 : i1 to i32
    %c0_i32_12 = arith.constant 0 : i32
    %22 = arith.cmpi ne, %21, %c0_i32_12 : i32
    scf.if %22 {
      %c0_13 = arith.constant 0 : index
      %c0_14 = arith.constant 0 : index
      %23 = vector.load %arg6[%c0_13, %c0_14] : memref<1x256xf32, #tpu.memory_space<vmem>>, vector<1x256xf32>
      %cst = arith.constant 2.500000e-01 : f32
      %24 = vector.broadcast %cst : f32 to vector<1x256xf32>
      %25 = arith.mulf %23, %24 : vector<1x256xf32>
      %c0_15 = arith.constant 0 : index
      %c0_16 = arith.constant 0 : index
      %26 = vector.load %arg7[%c0_15, %c0_16] : memref<1x256xf32, #tpu.memory_space<vmem>>, vector<1x256xf32>
      %cst_17 = arith.constant 0.000000e+00 : f32
      %27 = vector.broadcast %cst_17 : f32 to vector<2x1x51xf32>
      %c0_18 = arith.constant 0 : index
      %c0_19 = arith.constant 0 : index
      %c0_20 = arith.constant 0 : index
      %28 = vector.load %arg8[%c0_18, %c0_19, %c0_20] : memref<2x1x358xf32, #tpu.memory_space<vmem>>, vector<2x1x51xf32>
      tpu.vector_store %arg8[%c0_18, %c0_19, %c0_20], %27 {strides = array<i32>} : memref<2x1x358xf32, #tpu.memory_space<vmem>>, vector<2x1x51xf32>,
      %cst_21 = arith.constant 0.000000e+00 : f32
      %29 = vector.broadcast %cst_21 : f32 to vector<2x1x51xf32>
      %c0_22 = arith.constant 0 : index
      %c0_23 = arith.constant 0 : index
      %c307 = arith.constant 307 : index
      %30 = vector.load %arg8[%c0_22, %c0_23, %c307] : memref<2x1x358xf32, #tpu.memory_space<vmem>>, vector<2x1x51xf32>
      tpu.vector_store %arg8[%c0_22, %c0_23, %c307], %29 {strides = array<i32>} : memref<2x1x358xf32, #tpu.memory_space<vmem>>, vector<2x1x51xf32>,
      %c0_24 = arith.constant 0 : index
      %c0_25 = arith.constant 0 : index
      %c51 = arith.constant 51 : index
      %31 = vector.load %arg8[%c0_24, %c0_25, %c51] : memref<2x1x358xf32, #tpu.memory_space<vmem>>, vector<1x1x256xf32>
      %32 = vector.shape_cast %31 : vector<1x1x256xf32> to vector<1x256xf32>
      %33 = vector.shape_cast %25 : vector<1x256xf32> to vector<1x1x256xf32>
      tpu.vector_store %arg8[%c0_24, %c0_25, %c51], %33 {strides = array<i32>} : memref<2x1x358xf32, #tpu.memory_space<vmem>>, vector<1x1x256xf32>,
      %c1_26 = arith.constant 1 : index
      %c0_27 = arith.constant 0 : index
      %c51_28 = arith.constant 51 : index
      %34 = vector.load %arg8[%c1_26, %c0_27, %c51_28] : memref<2x1x358xf32, #tpu.memory_space<vmem>>, vector<1x1x256xf32>
      %35 = vector.shape_cast %34 : vector<1x1x256xf32> to vector<1x256xf32>
      %36 = vector.shape_cast %26 : vector<1x256xf32> to vector<1x1x256xf32>
      tpu.vector_store %arg8[%c1_26, %c0_27, %c51_28], %36 {strides = array<i32>} : memref<2x1x358xf32, #tpu.memory_space<vmem>>, vector<1x1x256xf32>,
      %c0_29 = arith.constant 0 : index
      %c0_30 = arith.constant 0 : index
      %c0_31 = arith.constant 0 : index
      %37 = vector.load %arg8[%c0_29, %c0_30, %c0_31] : memref<2x1x358xf32, #tpu.memory_space<vmem>>, vector<1x1x358xf32>
      %38 = vector.shape_cast %37 : vector<1x1x358xf32> to vector<1x358xf32>
      %c1_32 = arith.constant 1 : index
      %c0_33 = arith.constant 0 : index
      %c0_34 = arith.constant 0 : index
      %39 = vector.load %arg8[%c1_32, %c0_33, %c0_34] : memref<2x1x358xf32, #tpu.memory_space<vmem>>, vector<1x1x358xf32>
      %40 = vector.shape_cast %39 : vector<1x1x358xf32> to vector<1x358xf32>
      %cst_35 = arith.constant 0.000000e+00 : f32
      %41 = vector.broadcast %cst_35 : f32 to vector<1x256xf32>
      %cst_36 = arith.constant 0.000000e+00 : f32
      %42 = vector.broadcast %cst_36 : f32 to vector<1x256xf32>
      %cst_37 = arith.constant 0.000000e+00 : f32
      %43 = vector.broadcast %cst_37 : f32 to vector<1x256xf32>
      %cst_38 = arith.constant 0.000000e+00 : f32
      %44 = vector.broadcast %cst_38 : f32 to vector<1x256xf32>
      %45 = vector.extract_strided_slice %38 {offsets = [0, 0], sizes = [1, 256], strides = [1, 1]} : vector<1x358xf32> to vector<1x256xf32>
      %c0_39 = arith.constant 0 : index
      %46 = memref.load %arg2[%c0_39] : memref<98xf32, #tpu.memory_space<smem>>
      %47 = vector.broadcast %46 : f32 to vector<1x256xf32>
      %48 = arith.mulf %45, %47 : vector<1x256xf32>
      %49 = arith.addf %43, %48 : vector<1x256xf32>
      %50 = vector.extract_strided_slice %40 {offsets = [0, 0], sizes = [1, 256], strides = [1, 1]} : vector<1x358xf32> to vector<1x256xf32>
      %c49 = arith.constant 49 : index
      %51 = memref.load %arg2[%c49] : memref<98xf32, #tpu.memory_space<smem>>
      %52 = vector.broadcast %51 : f32 to vector<1x256xf32>
      %53 = arith.mulf %50, %52 : vector<1x256xf32>
      %54 = arith.addf %44, %53 : vector<1x256xf32>
      %55 = vector.extract_strided_slice %38 {offsets = [0, 16], sizes = [1, 256], strides = [1, 1]} : vector<1x358xf32> to vector<1x256xf32>
      %c7 = arith.constant 7 : index
      %56 = memref.load %arg2[%c7] : memref<98xf32, #tpu.memory_space<smem>>
      %57 = vector.broadcast %56 : f32 to vector<1x256xf32>
      %58 = arith.mulf %55, %57 : vector<1x256xf32>
      %59 = arith.addf %49, %58 : vector<1x256xf32>
      %60 = vector.extract_strided_slice %40 {offsets = [0, 16], sizes = [1, 256], strides = [1, 1]} : vector<1x358xf32> to vector<1x256xf32>
      %c56 = arith.constant 56 : index
      %61 = memref.load %arg2[%c56] : memref<98xf32, #tpu.memory_space<smem>>
      %62 = vector.broadcast %61 : f32 to vector<1x256xf32>
      %63 = arith.mulf %60, %62 : vector<1x256xf32>
      %64 = arith.addf %54, %63 : vector<1x256xf32>
      %65 = vector.extract_strided_slice %38 {offsets = [0, 32], sizes = [1, 256], strides = [1, 1]} : vector<1x358xf32> to vector<1x256xf32>
      %c14 = arith.constant 14 : index
      %66 = memref.load %arg2[%c14] : memref<98xf32, #tpu.memory_space<smem>>
      %67 = vector.broadcast %66 : f32 to vector<1x256xf32>
      %68 = arith.mulf %65, %67 : vector<1x256xf32>
      %69 = arith.addf %59, %68 : vector<1x256xf32>
      %70 = vector.extract_strided_slice %40 {offsets = [0, 32], sizes = [1, 256], strides = [1, 1]} : vector<1x358xf32> to vector<1x256xf32>
      %c63 = arith.constant 63 : index
      %71 = memref.load %arg2[%c63] : memref<98xf32, #tpu.memory_space<smem>>
      %72 = vector.broadcast %71 : f32 to vector<1x256xf32>
      %73 = arith.mulf %70, %72 : vector<1x256xf32>
      %74 = arith.addf %64, %73 : vector<1x256xf32>
      %75 = vector.extract_strided_slice %38 {offsets = [0, 48], sizes = [1, 256], strides = [1, 1]} : vector<1x358xf32> to vector<1x256xf32>
      %c21 = arith.constant 21 : index
      %76 = memref.load %arg2[%c21] : memref<98xf32, #tpu.memory_space<smem>>
      %77 = vector.broadcast %76 : f32 to vector<1x256xf32>
      %78 = arith.mulf %75, %77 : vector<1x256xf32>
      %79 = arith.addf %69, %78 : vector<1x256xf32>
      %80 = vector.extract_strided_slice %40 {offsets = [0, 48], sizes = [1, 256], strides = [1, 1]} : vector<1x358xf32> to vector<1x256xf32>
      %c70 = arith.constant 70 : index
      %81 = memref.load %arg2[%c70] : memref<98xf32, #tpu.memory_space<smem>>
      %82 = vector.broadcast %81 : f32 to vector<1x256xf32>
      %83 = arith.mulf %80, %82 : vector<1x256xf32>
      %84 = arith.addf %74, %83 : vector<1x256xf32>
      %85 = vector.extract_strided_slice %38 {offsets = [0, 64], sizes = [1, 256], strides = [1, 1]} : vector<1x358xf32> to vector<1x256xf32>
      %c28 = arith.constant 28 : index
      %86 = memref.load %arg2[%c28] : memref<98xf32, #tpu.memory_space<smem>>
      %87 = vector.broadcast %86 : f32 to vector<1x256xf32>
      %88 = arith.mulf %85, %87 : vector<1x256xf32>
      %89 = arith.addf %79, %88 : vector<1x256xf32>
      %90 = vector.extract_strided_slice %40 {offsets = [0, 64], sizes = [1, 256], strides = [1, 1]} : vector<1x358xf32> to vector<1x256xf32>
      %c77 = arith.constant 77 : index
      %91 = memref.load %arg2[%c77] : memref<98xf32, #tpu.memory_space<smem>>
      %92 = vector.broadcast %91 : f32 to vector<1x256xf32>
      %93 = arith.mulf %90, %92 : vector<1x256xf32>
      %94 = arith.addf %84, %93 : vector<1x256xf32>
      %95 = vector.extract_strided_slice %38 {offsets = [0, 80], sizes = [1, 256], strides = [1, 1]} : vector<1x358xf32> to vector<1x256xf32>
      %c35 = arith.constant 35 : index
      %96 = memref.load %arg2[%c35] : memref<98xf32, #tpu.memory_space<smem>>
      %97 = vector.broadcast %96 : f32 to vector<1x256xf32>
      %98 = arith.mulf %95, %97 : vector<1x256xf32>
      %99 = arith.addf %89, %98 : vector<1x256xf32>
      %100 = vector.extract_strided_slice %40 {offsets = [0, 80], sizes = [1, 256], strides = [1, 1]} : vector<1x358xf32> to vector<1x256xf32>
      %c84 = arith.constant 84 : index
      %101 = memref.load %arg2[%c84] : memref<98xf32, #tpu.memory_space<smem>>
      %102 = vector.broadcast %101 : f32 to vector<1x256xf32>
      %103 = arith.mulf %100, %102 : vector<1x256xf32>
      %104 = arith.addf %94, %103 : vector<1x256xf32>
      %105 = vector.extract_strided_slice %38 {offsets = [0, 96], sizes = [1, 256], strides = [1, 1]} : vector<1x358xf32> to vector<1x256xf32>
      %c42 = arith.constant 42 : index
      %106 = memref.load %arg2[%c42] : memref<98xf32, #tpu.memory_space<smem>>
      %107 = vector.broadcast %106 : f32 to vector<1x256xf32>
      %108 = arith.mulf %105, %107 : vector<1x256xf32>
      %109 = arith.addf %99, %108 : vector<1x256xf32>
      %110 = vector.extract_strided_slice %40 {offsets = [0, 96], sizes = [1, 256], strides = [1, 1]} : vector<1x358xf32> to vector<1x256xf32>
      %c91 = arith.constant 91 : index
      %111 = memref.load %arg2[%c91] : memref<98xf32, #tpu.memory_space<smem>>
      %112 = vector.broadcast %111 : f32 to vector<1x256xf32>
      %113 = arith.mulf %110, %112 : vector<1x256xf32>
      %114 = arith.addf %104, %113 : vector<1x256xf32>
      %115 = arith.addf %109, %114 : vector<1x256xf32>
      %c0_40 = arith.constant 0 : index
      %c0_41 = arith.constant 0 : index
      %116 = vector.load %arg3[%c0_40, %c0_41] : memref<7x256xf32, #tpu.memory_space<vmem>>, vector<1x256xf32>
      %117 = arith.mulf %115, %116 : vector<1x256xf32>
      %118 = arith.addf %41, %117 : vector<1x256xf32>
      %cst_42 = arith.constant 0.000000e+00 : f32
      %119 = vector.broadcast %cst_42 : f32 to vector<1x256xf32>
      %cst_43 = arith.constant 0.000000e+00 : f32
      %120 = vector.broadcast %cst_43 : f32 to vector<1x256xf32>
      %121 = vector.extract_strided_slice %38 {offsets = [0, 1], sizes = [1, 256], strides = [1, 1]} : vector<1x358xf32> to vector<1x256xf32>
      %c1_44 = arith.constant 1 : index
      %122 = memref.load %arg2[%c1_44] : memref<98xf32, #tpu.memory_space<smem>>
      %123 = vector.broadcast %122 : f32 to vector<1x256xf32>
      %124 = arith.mulf %121, %123 : vector<1x256xf32>
      %125 = arith.addf %119, %124 : vector<1x256xf32>
      %126 = vector.extract_strided_slice %40 {offsets = [0, 1], sizes = [1, 256], strides = [1, 1]} : vector<1x358xf32> to vector<1x256xf32>
      %c50 = arith.constant 50 : index
      %127 = memref.load %arg2[%c50] : memref<98xf32, #tpu.memory_space<smem>>
      %128 = vector.broadcast %127 : f32 to vector<1x256xf32>
      %129 = arith.mulf %126, %128 : vector<1x256xf32>
      %130 = arith.addf %120, %129 : vector<1x256xf32>
      %131 = vector.extract_strided_slice %38 {offsets = [0, 17], sizes = [1, 256], strides = [1, 1]} : vector<1x358xf32> to vector<1x256xf32>
      %c8 = arith.constant 8 : index
      %132 = memref.load %arg2[%c8] : memref<98xf32, #tpu.memory_space<smem>>
      %133 = vector.broadcast %132 : f32 to vector<1x256xf32>
      %134 = arith.mulf %131, %133 : vector<1x256xf32>
      %135 = arith.addf %125, %134 : vector<1x256xf32>
      %136 = vector.extract_strided_slice %40 {offsets = [0, 17], sizes = [1, 256], strides = [1, 1]} : vector<1x358xf32> to vector<1x256xf32>
      %c57 = arith.constant 57 : index
      %137 = memref.load %arg2[%c57] : memref<98xf32, #tpu.memory_space<smem>>
      %138 = vector.broadcast %137 : f32 to vector<1x256xf32>
      %139 = arith.mulf %136, %138 : vector<1x256xf32>
      %140 = arith.addf %130, %139 : vector<1x256xf32>
      %141 = vector.extract_strided_slice %38 {offsets = [0, 33], sizes = [1, 256], strides = [1, 1]} : vector<1x358xf32> to vector<1x256xf32>
      %c15 = arith.constant 15 : index
      %142 = memref.load %arg2[%c15] : memref<98xf32, #tpu.memory_space<smem>>
      %143 = vector.broadcast %142 : f32 to vector<1x256xf32>
      %144 = arith.mulf %141, %143 : vector<1x256xf32>
      %145 = arith.addf %135, %144 : vector<1x256xf32>
      %146 = vector.extract_strided_slice %40 {offsets = [0, 33], sizes = [1, 256], strides = [1, 1]} : vector<1x358xf32> to vector<1x256xf32>
      %c64 = arith.constant 64 : index
      %147 = memref.load %arg2[%c64] : memref<98xf32, #tpu.memory_space<smem>>
      %148 = vector.broadcast %147 : f32 to vector<1x256xf32>
      %149 = arith.mulf %146, %148 : vector<1x256xf32>
      %150 = arith.addf %140, %149 : vector<1x256xf32>
      %151 = vector.extract_strided_slice %38 {offsets = [0, 49], sizes = [1, 256], strides = [1, 1]} : vector<1x358xf32> to vector<1x256xf32>
      %c22 = arith.constant 22 : index
      %152 = memref.load %arg2[%c22] : memref<98xf32, #tpu.memory_space<smem>>
      %153 = vector.broadcast %152 : f32 to vector<1x256xf32>
      %154 = arith.mulf %151, %153 : vector<1x256xf32>
      %155 = arith.addf %145, %154 : vector<1x256xf32>
      %156 = vector.extract_strided_slice %40 {offsets = [0, 49], sizes = [1, 256], strides = [1, 1]} : vector<1x358xf32> to vector<1x256xf32>
      %c71 = arith.constant 71 : index
      %157 = memref.load %arg2[%c71] : memref<98xf32, #tpu.memory_space<smem>>
      %158 = vector.broadcast %157 : f32 to vector<1x256xf32>
      %159 = arith.mulf %156, %158 : vector<1x256xf32>
      %160 = arith.addf %150, %159 : vector<1x256xf32>
      %161 = vector.extract_strided_slice %38 {offsets = [0, 65], sizes = [1, 256], strides = [1, 1]} : vector<1x358xf32> to vector<1x256xf32>
      %c29 = arith.constant 29 : index
      %162 = memref.load %arg2[%c29] : memref<98xf32, #tpu.memory_space<smem>>
      %163 = vector.broadcast %162 : f32 to vector<1x256xf32>
      %164 = arith.mulf %161, %163 : vector<1x256xf32>
      %165 = arith.addf %155, %164 : vector<1x256xf32>
      %166 = vector.extract_strided_slice %40 {offsets = [0, 65], sizes = [1, 256], strides = [1, 1]} : vector<1x358xf32> to vector<1x256xf32>
      %c78 = arith.constant 78 : index
      %167 = memref.load %arg2[%c78] : memref<98xf32, #tpu.memory_space<smem>>
      %168 = vector.broadcast %167 : f32 to vector<1x256xf32>
      %169 = arith.mulf %166, %168 : vector<1x256xf32>
      %170 = arith.addf %160, %169 : vector<1x256xf32>
      %171 = vector.extract_strided_slice %38 {offsets = [0, 81], sizes = [1, 256], strides = [1, 1]} : vector<1x358xf32> to vector<1x256xf32>
      %c36 = arith.constant 36 : index
      %172 = memref.load %arg2[%c36] : memref<98xf32, #tpu.memory_space<smem>>
      %173 = vector.broadcast %172 : f32 to vector<1x256xf32>
      %174 = arith.mulf %171, %173 : vector<1x256xf32>
      %175 = arith.addf %165, %174 : vector<1x256xf32>
      %176 = vector.extract_strided_slice %40 {offsets = [0, 81], sizes = [1, 256], strides = [1, 1]} : vector<1x358xf32> to vector<1x256xf32>
      %c85 = arith.constant 85 : index
      %177 = memref.load %arg2[%c85] : memref<98xf32, #tpu.memory_space<smem>>
      %178 = vector.broadcast %177 : f32 to vector<1x256xf32>
      %179 = arith.mulf %176, %178 : vector<1x256xf32>
      %180 = arith.addf %170, %179 : vector<1x256xf32>
      %181 = vector.extract_strided_slice %38 {offsets = [0, 97], sizes = [1, 256], strides = [1, 1]} : vector<1x358xf32> to vector<1x256xf32>
      %c43 = arith.constant 43 : index
      %182 = memref.load %arg2[%c43] : memref<98xf32, #tpu.memory_space<smem>>
      %183 = vector.broadcast %182 : f32 to vector<1x256xf32>
      %184 = arith.mulf %181, %183 : vector<1x256xf32>
      %185 = arith.addf %175, %184 : vector<1x256xf32>
      %186 = vector.extract_strided_slice %40 {offsets = [0, 97], sizes = [1, 256], strides = [1, 1]} : vector<1x358xf32> to vector<1x256xf32>
      %c92 = arith.constant 92 : index
      %187 = memref.load %arg2[%c92] : memref<98xf32, #tpu.memory_space<smem>>
      %188 = vector.broadcast %187 : f32 to vector<1x256xf32>
      %189 = arith.mulf %186, %188 : vector<1x256xf32>
      %190 = arith.addf %180, %189 : vector<1x256xf32>
      %191 = arith.addf %185, %190 : vector<1x256xf32>
      %c1_45 = arith.constant 1 : index
      %c0_46 = arith.constant 0 : index
      %192 = vector.load %arg3[%c1_45, %c0_46] : memref<7x256xf32, #tpu.memory_space<vmem>>, vector<1x256xf32>
      %193 = arith.mulf %191, %192 : vector<1x256xf32>
      %194 = arith.addf %42, %193 : vector<1x256xf32>
      %cst_47 = arith.constant 0.000000e+00 : f32
      %195 = vector.broadcast %cst_47 : f32 to vector<1x256xf32>
      %cst_48 = arith.constant 0.000000e+00 : f32
      %196 = vector.broadcast %cst_48 : f32 to vector<1x256xf32>
      %197 = vector.extract_strided_slice %38 {offsets = [0, 2], sizes = [1, 256], strides = [1, 1]} : vector<1x358xf32> to vector<1x256xf32>
      %c2_49 = arith.constant 2 : index
      %198 = memref.load %arg2[%c2_49] : memref<98xf32, #tpu.memory_space<smem>>
      %199 = vector.broadcast %198 : f32 to vector<1x256xf32>
      %200 = arith.mulf %197, %199 : vector<1x256xf32>
      %201 = arith.addf %195, %200 : vector<1x256xf32>
      %202 = vector.extract_strided_slice %40 {offsets = [0, 2], sizes = [1, 256], strides = [1, 1]} : vector<1x358xf32> to vector<1x256xf32>
      %c51_50 = arith.constant 51 : index
      %203 = memref.load %arg2[%c51_50] : memref<98xf32, #tpu.memory_space<smem>>
      %204 = vector.broadcast %203 : f32 to vector<1x256xf32>
      %205 = arith.mulf %202, %204 : vector<1x256xf32>
      %206 = arith.addf %196, %205 : vector<1x256xf32>
      %207 = vector.extract_strided_slice %38 {offsets = [0, 18], sizes = [1, 256], strides = [1, 1]} : vector<1x358xf32> to vector<1x256xf32>
      %c9 = arith.constant 9 : index
      %208 = memref.load %arg2[%c9] : memref<98xf32, #tpu.memory_space<smem>>
      %209 = vector.broadcast %208 : f32 to vector<1x256xf32>
      %210 = arith.mulf %207, %209 : vector<1x256xf32>
      %211 = arith.addf %201, %210 : vector<1x256xf32>
      %212 = vector.extract_strided_slice %40 {offsets = [0, 18], sizes = [1, 256], strides = [1, 1]} : vector<1x358xf32> to vector<1x256xf32>
      %c58 = arith.constant 58 : index
      %213 = memref.load %arg2[%c58] : memref<98xf32, #tpu.memory_space<smem>>
      %214 = vector.broadcast %213 : f32 to vector<1x256xf32>
      %215 = arith.mulf %212, %214 : vector<1x256xf32>
      %216 = arith.addf %206, %215 : vector<1x256xf32>
      %217 = vector.extract_strided_slice %38 {offsets = [0, 34], sizes = [1, 256], strides = [1, 1]} : vector<1x358xf32> to vector<1x256xf32>
      %c16 = arith.constant 16 : index
      %218 = memref.load %arg2[%c16] : memref<98xf32, #tpu.memory_space<smem>>
      %219 = vector.broadcast %218 : f32 to vector<1x256xf32>
      %220 = arith.mulf %217, %219 : vector<1x256xf32>
      %221 = arith.addf %211, %220 : vector<1x256xf32>
      %222 = vector.extract_strided_slice %40 {offsets = [0, 34], sizes = [1, 256], strides = [1, 1]} : vector<1x358xf32> to vector<1x256xf32>
      %c65 = arith.constant 65 : index
      %223 = memref.load %arg2[%c65] : memref<98xf32, #tpu.memory_space<smem>>
      %224 = vector.broadcast %223 : f32 to vector<1x256xf32>
      %225 = arith.mulf %222, %224 : vector<1x256xf32>
      %226 = arith.addf %216, %225 : vector<1x256xf32>
      %227 = vector.extract_strided_slice %38 {offsets = [0, 50], sizes = [1, 256], strides = [1, 1]} : vector<1x358xf32> to vector<1x256xf32>
      %c23 = arith.constant 23 : index
      %228 = memref.load %arg2[%c23] : memref<98xf32, #tpu.memory_space<smem>>
      %229 = vector.broadcast %228 : f32 to vector<1x256xf32>
      %230 = arith.mulf %227, %229 : vector<1x256xf32>
      %231 = arith.addf %221, %230 : vector<1x256xf32>
      %232 = vector.extract_strided_slice %40 {offsets = [0, 50], sizes = [1, 256], strides = [1, 1]} : vector<1x358xf32> to vector<1x256xf32>
      %c72 = arith.constant 72 : index
      %233 = memref.load %arg2[%c72] : memref<98xf32, #tpu.memory_space<smem>>
      %234 = vector.broadcast %233 : f32 to vector<1x256xf32>
      %235 = arith.mulf %232, %234 : vector<1x256xf32>
      %236 = arith.addf %226, %235 : vector<1x256xf32>
      %237 = vector.extract_strided_slice %38 {offsets = [0, 66], sizes = [1, 256], strides = [1, 1]} : vector<1x358xf32> to vector<1x256xf32>
      %c30 = arith.constant 30 : index
      %238 = memref.load %arg2[%c30] : memref<98xf32, #tpu.memory_space<smem>>
      %239 = vector.broadcast %238 : f32 to vector<1x256xf32>
      %240 = arith.mulf %237, %239 : vector<1x256xf32>
      %241 = arith.addf %231, %240 : vector<1x256xf32>
      %242 = vector.extract_strided_slice %40 {offsets = [0, 66], sizes = [1, 256], strides = [1, 1]} : vector<1x358xf32> to vector<1x256xf32>
      %c79 = arith.constant 79 : index
      %243 = memref.load %arg2[%c79] : memref<98xf32, #tpu.memory_space<smem>>
      %244 = vector.broadcast %243 : f32 to vector<1x256xf32>
      %245 = arith.mulf %242, %244 : vector<1x256xf32>
      %246 = arith.addf %236, %245 : vector<1x256xf32>
      %247 = vector.extract_strided_slice %38 {offsets = [0, 82], sizes = [1, 256], strides = [1, 1]} : vector<1x358xf32> to vector<1x256xf32>
      %c37 = arith.constant 37 : index
      %248 = memref.load %arg2[%c37] : memref<98xf32, #tpu.memory_space<smem>>
      %249 = vector.broadcast %248 : f32 to vector<1x256xf32>
      %250 = arith.mulf %247, %249 : vector<1x256xf32>
      %251 = arith.addf %241, %250 : vector<1x256xf32>
      %252 = vector.extract_strided_slice %40 {offsets = [0, 82], sizes = [1, 256], strides = [1, 1]} : vector<1x358xf32> to vector<1x256xf32>
      %c86 = arith.constant 86 : index
      %253 = memref.load %arg2[%c86] : memref<98xf32, #tpu.memory_space<smem>>
      %254 = vector.broadcast %253 : f32 to vector<1x256xf32>
      %255 = arith.mulf %252, %254 : vector<1x256xf32>
      %256 = arith.addf %246, %255 : vector<1x256xf32>
      %257 = vector.extract_strided_slice %38 {offsets = [0, 98], sizes = [1, 256], strides = [1, 1]} : vector<1x358xf32> to vector<1x256xf32>
      %c44 = arith.constant 44 : index
      %258 = memref.load %arg2[%c44] : memref<98xf32, #tpu.memory_space<smem>>
      %259 = vector.broadcast %258 : f32 to vector<1x256xf32>
      %260 = arith.mulf %257, %259 : vector<1x256xf32>
      %261 = arith.addf %251, %260 : vector<1x256xf32>
      %262 = vector.extract_strided_slice %40 {offsets = [0, 98], sizes = [1, 256], strides = [1, 1]} : vector<1x358xf32> to vector<1x256xf32>
      %c93 = arith.constant 93 : index
      %263 = memref.load %arg2[%c93] : memref<98xf32, #tpu.memory_space<smem>>
      %264 = vector.broadcast %263 : f32 to vector<1x256xf32>
      %265 = arith.mulf %262, %264 : vector<1x256xf32>
      %266 = arith.addf %256, %265 : vector<1x256xf32>
      %267 = arith.addf %261, %266 : vector<1x256xf32>
      %c2_51 = arith.constant 2 : index
      %c0_52 = arith.constant 0 : index
      %268 = vector.load %arg3[%c2_51, %c0_52] : memref<7x256xf32, #tpu.memory_space<vmem>>, vector<1x256xf32>
      %269 = arith.mulf %267, %268 : vector<1x256xf32>
      %270 = arith.addf %118, %269 : vector<1x256xf32>
      %cst_53 = arith.constant 0.000000e+00 : f32
      %271 = vector.broadcast %cst_53 : f32 to vector<1x256xf32>
      %cst_54 = arith.constant 0.000000e+00 : f32
      %272 = vector.broadcast %cst_54 : f32 to vector<1x256xf32>
      %273 = vector.extract_strided_slice %38 {offsets = [0, 3], sizes = [1, 256], strides = [1, 1]} : vector<1x358xf32> to vector<1x256xf32>
      %c3_55 = arith.constant 3 : index
      %274 = memref.load %arg2[%c3_55] : memref<98xf32, #tpu.memory_space<smem>>
      %275 = vector.broadcast %274 : f32 to vector<1x256xf32>
      %276 = arith.mulf %273, %275 : vector<1x256xf32>
      %277 = arith.addf %271, %276 : vector<1x256xf32>
      %278 = vector.extract_strided_slice %40 {offsets = [0, 3], sizes = [1, 256], strides = [1, 1]} : vector<1x358xf32> to vector<1x256xf32>
      %c52 = arith.constant 52 : index
      %279 = memref.load %arg2[%c52] : memref<98xf32, #tpu.memory_space<smem>>
      %280 = vector.broadcast %279 : f32 to vector<1x256xf32>
      %281 = arith.mulf %278, %280 : vector<1x256xf32>
      %282 = arith.addf %272, %281 : vector<1x256xf32>
      %283 = vector.extract_strided_slice %38 {offsets = [0, 19], sizes = [1, 256], strides = [1, 1]} : vector<1x358xf32> to vector<1x256xf32>
      %c10 = arith.constant 10 : index
      %284 = memref.load %arg2[%c10] : memref<98xf32, #tpu.memory_space<smem>>
      %285 = vector.broadcast %284 : f32 to vector<1x256xf32>
      %286 = arith.mulf %283, %285 : vector<1x256xf32>
      %287 = arith.addf %277, %286 : vector<1x256xf32>
      %288 = vector.extract_strided_slice %40 {offsets = [0, 19], sizes = [1, 256], strides = [1, 1]} : vector<1x358xf32> to vector<1x256xf32>
      %c59 = arith.constant 59 : index
      %289 = memref.load %arg2[%c59] : memref<98xf32, #tpu.memory_space<smem>>
      %290 = vector.broadcast %289 : f32 to vector<1x256xf32>
      %291 = arith.mulf %288, %290 : vector<1x256xf32>
      %292 = arith.addf %282, %291 : vector<1x256xf32>
      %293 = vector.extract_strided_slice %38 {offsets = [0, 35], sizes = [1, 256], strides = [1, 1]} : vector<1x358xf32> to vector<1x256xf32>
      %c17 = arith.constant 17 : index
      %294 = memref.load %arg2[%c17] : memref<98xf32, #tpu.memory_space<smem>>
      %295 = vector.broadcast %294 : f32 to vector<1x256xf32>
      %296 = arith.mulf %293, %295 : vector<1x256xf32>
      %297 = arith.addf %287, %296 : vector<1x256xf32>
      %298 = vector.extract_strided_slice %40 {offsets = [0, 35], sizes = [1, 256], strides = [1, 1]} : vector<1x358xf32> to vector<1x256xf32>
      %c66 = arith.constant 66 : index
      %299 = memref.load %arg2[%c66] : memref<98xf32, #tpu.memory_space<smem>>
      %300 = vector.broadcast %299 : f32 to vector<1x256xf32>
      %301 = arith.mulf %298, %300 : vector<1x256xf32>
      %302 = arith.addf %292, %301 : vector<1x256xf32>
      %303 = vector.extract_strided_slice %38 {offsets = [0, 51], sizes = [1, 256], strides = [1, 1]} : vector<1x358xf32> to vector<1x256xf32>
      %c24 = arith.constant 24 : index
      %304 = memref.load %arg2[%c24] : memref<98xf32, #tpu.memory_space<smem>>
      %305 = vector.broadcast %304 : f32 to vector<1x256xf32>
      %306 = arith.mulf %303, %305 : vector<1x256xf32>
      %307 = arith.addf %297, %306 : vector<1x256xf32>
      %308 = vector.extract_strided_slice %40 {offsets = [0, 51], sizes = [1, 256], strides = [1, 1]} : vector<1x358xf32> to vector<1x256xf32>
      %c73 = arith.constant 73 : index
      %309 = memref.load %arg2[%c73] : memref<98xf32, #tpu.memory_space<smem>>
      %310 = vector.broadcast %309 : f32 to vector<1x256xf32>
      %311 = arith.mulf %308, %310 : vector<1x256xf32>
      %312 = arith.addf %302, %311 : vector<1x256xf32>
      %313 = vector.extract_strided_slice %38 {offsets = [0, 67], sizes = [1, 256], strides = [1, 1]} : vector<1x358xf32> to vector<1x256xf32>
      %c31 = arith.constant 31 : index
      %314 = memref.load %arg2[%c31] : memref<98xf32, #tpu.memory_space<smem>>
      %315 = vector.broadcast %314 : f32 to vector<1x256xf32>
      %316 = arith.mulf %313, %315 : vector<1x256xf32>
      %317 = arith.addf %307, %316 : vector<1x256xf32>
      %318 = vector.extract_strided_slice %40 {offsets = [0, 67], sizes = [1, 256], strides = [1, 1]} : vector<1x358xf32> to vector<1x256xf32>
      %c80 = arith.constant 80 : index
      %319 = memref.load %arg2[%c80] : memref<98xf32, #tpu.memory_space<smem>>
      %320 = vector.broadcast %319 : f32 to vector<1x256xf32>
      %321 = arith.mulf %318, %320 : vector<1x256xf32>
      %322 = arith.addf %312, %321 : vector<1x256xf32>
      %323 = vector.extract_strided_slice %38 {offsets = [0, 83], sizes = [1, 256], strides = [1, 1]} : vector<1x358xf32> to vector<1x256xf32>
      %c38 = arith.constant 38 : index
      %324 = memref.load %arg2[%c38] : memref<98xf32, #tpu.memory_space<smem>>
      %325 = vector.broadcast %324 : f32 to vector<1x256xf32>
      %326 = arith.mulf %323, %325 : vector<1x256xf32>
      %327 = arith.addf %317, %326 : vector<1x256xf32>
      %328 = vector.extract_strided_slice %40 {offsets = [0, 83], sizes = [1, 256], strides = [1, 1]} : vector<1x358xf32> to vector<1x256xf32>
      %c87 = arith.constant 87 : index
      %329 = memref.load %arg2[%c87] : memref<98xf32, #tpu.memory_space<smem>>
      %330 = vector.broadcast %329 : f32 to vector<1x256xf32>
      %331 = arith.mulf %328, %330 : vector<1x256xf32>
      %332 = arith.addf %322, %331 : vector<1x256xf32>
      %333 = vector.extract_strided_slice %38 {offsets = [0, 99], sizes = [1, 256], strides = [1, 1]} : vector<1x358xf32> to vector<1x256xf32>
      %c45 = arith.constant 45 : index
      %334 = memref.load %arg2[%c45] : memref<98xf32, #tpu.memory_space<smem>>
      %335 = vector.broadcast %334 : f32 to vector<1x256xf32>
      %336 = arith.mulf %333, %335 : vector<1x256xf32>
      %337 = arith.addf %327, %336 : vector<1x256xf32>
      %338 = vector.extract_strided_slice %40 {offsets = [0, 99], sizes = [1, 256], strides = [1, 1]} : vector<1x358xf32> to vector<1x256xf32>
      %c94 = arith.constant 94 : index
      %339 = memref.load %arg2[%c94] : memref<98xf32, #tpu.memory_space<smem>>
      %340 = vector.broadcast %339 : f32 to vector<1x256xf32>
      %341 = arith.mulf %338, %340 : vector<1x256xf32>
      %342 = arith.addf %332, %341 : vector<1x256xf32>
      %343 = arith.addf %337, %342 : vector<1x256xf32>
      %344 = arith.addf %194, %343 : vector<1x256xf32>
      %cst_56 = arith.constant 0.000000e+00 : f32
      %345 = vector.broadcast %cst_56 : f32 to vector<1x256xf32>
      %cst_57 = arith.constant 0.000000e+00 : f32
      %346 = vector.broadcast %cst_57 : f32 to vector<1x256xf32>
      %347 = vector.extract_strided_slice %38 {offsets = [0, 4], sizes = [1, 256], strides = [1, 1]} : vector<1x358xf32> to vector<1x256xf32>
      %c4 = arith.constant 4 : index
      %348 = memref.load %arg2[%c4] : memref<98xf32, #tpu.memory_space<smem>>
      %349 = vector.broadcast %348 : f32 to vector<1x256xf32>
      %350 = arith.mulf %347, %349 : vector<1x256xf32>
      %351 = arith.addf %345, %350 : vector<1x256xf32>
      %352 = vector.extract_strided_slice %40 {offsets = [0, 4], sizes = [1, 256], strides = [1, 1]} : vector<1x358xf32> to vector<1x256xf32>
      %c53 = arith.constant 53 : index
      %353 = memref.load %arg2[%c53] : memref<98xf32, #tpu.memory_space<smem>>
      %354 = vector.broadcast %353 : f32 to vector<1x256xf32>
      %355 = arith.mulf %352, %354 : vector<1x256xf32>
      %356 = arith.addf %346, %355 : vector<1x256xf32>
      %357 = vector.extract_strided_slice %38 {offsets = [0, 20], sizes = [1, 256], strides = [1, 1]} : vector<1x358xf32> to vector<1x256xf32>
      %c11 = arith.constant 11 : index
      %358 = memref.load %arg2[%c11] : memref<98xf32, #tpu.memory_space<smem>>
      %359 = vector.broadcast %358 : f32 to vector<1x256xf32>
      %360 = arith.mulf %357, %359 : vector<1x256xf32>
      %361 = arith.addf %351, %360 : vector<1x256xf32>
      %362 = vector.extract_strided_slice %40 {offsets = [0, 20], sizes = [1, 256], strides = [1, 1]} : vector<1x358xf32> to vector<1x256xf32>
      %c60 = arith.constant 60 : index
      %363 = memref.load %arg2[%c60] : memref<98xf32, #tpu.memory_space<smem>>
      %364 = vector.broadcast %363 : f32 to vector<1x256xf32>
      %365 = arith.mulf %362, %364 : vector<1x256xf32>
      %366 = arith.addf %356, %365 : vector<1x256xf32>
      %367 = vector.extract_strided_slice %38 {offsets = [0, 36], sizes = [1, 256], strides = [1, 1]} : vector<1x358xf32> to vector<1x256xf32>
      %c18 = arith.constant 18 : index
      %368 = memref.load %arg2[%c18] : memref<98xf32, #tpu.memory_space<smem>>
      %369 = vector.broadcast %368 : f32 to vector<1x256xf32>
      %370 = arith.mulf %367, %369 : vector<1x256xf32>
      %371 = arith.addf %361, %370 : vector<1x256xf32>
      %372 = vector.extract_strided_slice %40 {offsets = [0, 36], sizes = [1, 256], strides = [1, 1]} : vector<1x358xf32> to vector<1x256xf32>
      %c67 = arith.constant 67 : index
      %373 = memref.load %arg2[%c67] : memref<98xf32, #tpu.memory_space<smem>>
      %374 = vector.broadcast %373 : f32 to vector<1x256xf32>
      %375 = arith.mulf %372, %374 : vector<1x256xf32>
      %376 = arith.addf %366, %375 : vector<1x256xf32>
      %377 = vector.extract_strided_slice %38 {offsets = [0, 52], sizes = [1, 256], strides = [1, 1]} : vector<1x358xf32> to vector<1x256xf32>
      %c25 = arith.constant 25 : index
      %378 = memref.load %arg2[%c25] : memref<98xf32, #tpu.memory_space<smem>>
      %379 = vector.broadcast %378 : f32 to vector<1x256xf32>
      %380 = arith.mulf %377, %379 : vector<1x256xf32>
      %381 = arith.addf %371, %380 : vector<1x256xf32>
      %382 = vector.extract_strided_slice %40 {offsets = [0, 52], sizes = [1, 256], strides = [1, 1]} : vector<1x358xf32> to vector<1x256xf32>
      %c74 = arith.constant 74 : index
      %383 = memref.load %arg2[%c74] : memref<98xf32, #tpu.memory_space<smem>>
      %384 = vector.broadcast %383 : f32 to vector<1x256xf32>
      %385 = arith.mulf %382, %384 : vector<1x256xf32>
      %386 = arith.addf %376, %385 : vector<1x256xf32>
      %387 = vector.extract_strided_slice %38 {offsets = [0, 68], sizes = [1, 256], strides = [1, 1]} : vector<1x358xf32> to vector<1x256xf32>
      %c32 = arith.constant 32 : index
      %388 = memref.load %arg2[%c32] : memref<98xf32, #tpu.memory_space<smem>>
      %389 = vector.broadcast %388 : f32 to vector<1x256xf32>
      %390 = arith.mulf %387, %389 : vector<1x256xf32>
      %391 = arith.addf %381, %390 : vector<1x256xf32>
      %392 = vector.extract_strided_slice %40 {offsets = [0, 68], sizes = [1, 256], strides = [1, 1]} : vector<1x358xf32> to vector<1x256xf32>
      %c81 = arith.constant 81 : index
      %393 = memref.load %arg2[%c81] : memref<98xf32, #tpu.memory_space<smem>>
      %394 = vector.broadcast %393 : f32 to vector<1x256xf32>
      %395 = arith.mulf %392, %394 : vector<1x256xf32>
      %396 = arith.addf %386, %395 : vector<1x256xf32>
      %397 = vector.extract_strided_slice %38 {offsets = [0, 84], sizes = [1, 256], strides = [1, 1]} : vector<1x358xf32> to vector<1x256xf32>
      %c39 = arith.constant 39 : index
      %398 = memref.load %arg2[%c39] : memref<98xf32, #tpu.memory_space<smem>>
      %399 = vector.broadcast %398 : f32 to vector<1x256xf32>
      %400 = arith.mulf %397, %399 : vector<1x256xf32>
      %401 = arith.addf %391, %400 : vector<1x256xf32>
      %402 = vector.extract_strided_slice %40 {offsets = [0, 84], sizes = [1, 256], strides = [1, 1]} : vector<1x358xf32> to vector<1x256xf32>
      %c88 = arith.constant 88 : index
      %403 = memref.load %arg2[%c88] : memref<98xf32, #tpu.memory_space<smem>>
      %404 = vector.broadcast %403 : f32 to vector<1x256xf32>
      %405 = arith.mulf %402, %404 : vector<1x256xf32>
      %406 = arith.addf %396, %405 : vector<1x256xf32>
      %407 = vector.extract_strided_slice %38 {offsets = [0, 100], sizes = [1, 256], strides = [1, 1]} : vector<1x358xf32> to vector<1x256xf32>
      %c46 = arith.constant 46 : index
      %408 = memref.load %arg2[%c46] : memref<98xf32, #tpu.memory_space<smem>>
      %409 = vector.broadcast %408 : f32 to vector<1x256xf32>
      %410 = arith.mulf %407, %409 : vector<1x256xf32>
      %411 = arith.addf %401, %410 : vector<1x256xf32>
      %412 = vector.extract_strided_slice %40 {offsets = [0, 100], sizes = [1, 256], strides = [1, 1]} : vector<1x358xf32> to vector<1x256xf32>
      %c95 = arith.constant 95 : index
      %413 = memref.load %arg2[%c95] : memref<98xf32, #tpu.memory_space<smem>>
      %414 = vector.broadcast %413 : f32 to vector<1x256xf32>
      %415 = arith.mulf %412, %414 : vector<1x256xf32>
      %416 = arith.addf %406, %415 : vector<1x256xf32>
      %417 = arith.addf %411, %416 : vector<1x256xf32>
      %c4_58 = arith.constant 4 : index
      %c0_59 = arith.constant 0 : index
      %418 = vector.load %arg3[%c4_58, %c0_59] : memref<7x256xf32, #tpu.memory_space<vmem>>, vector<1x256xf32>
      %419 = arith.mulf %417, %418 : vector<1x256xf32>
      %420 = arith.addf %270, %419 : vector<1x256xf32>
      %cst_60 = arith.constant 0.000000e+00 : f32
      %421 = vector.broadcast %cst_60 : f32 to vector<1x256xf32>
      %cst_61 = arith.constant 0.000000e+00 : f32
      %422 = vector.broadcast %cst_61 : f32 to vector<1x256xf32>
      %423 = vector.extract_strided_slice %38 {offsets = [0, 5], sizes = [1, 256], strides = [1, 1]} : vector<1x358xf32> to vector<1x256xf32>
      %c5 = arith.constant 5 : index
      %424 = memref.load %arg2[%c5] : memref<98xf32, #tpu.memory_space<smem>>
      %425 = vector.broadcast %424 : f32 to vector<1x256xf32>
      %426 = arith.mulf %423, %425 : vector<1x256xf32>
      %427 = arith.addf %421, %426 : vector<1x256xf32>
      %428 = vector.extract_strided_slice %40 {offsets = [0, 5], sizes = [1, 256], strides = [1, 1]} : vector<1x358xf32> to vector<1x256xf32>
      %c54 = arith.constant 54 : index
      %429 = memref.load %arg2[%c54] : memref<98xf32, #tpu.memory_space<smem>>
      %430 = vector.broadcast %429 : f32 to vector<1x256xf32>
      %431 = arith.mulf %428, %430 : vector<1x256xf32>
      %432 = arith.addf %422, %431 : vector<1x256xf32>
      %433 = vector.extract_strided_slice %38 {offsets = [0, 21], sizes = [1, 256], strides = [1, 1]} : vector<1x358xf32> to vector<1x256xf32>
      %c12 = arith.constant 12 : index
      %434 = memref.load %arg2[%c12] : memref<98xf32, #tpu.memory_space<smem>>
      %435 = vector.broadcast %434 : f32 to vector<1x256xf32>
      %436 = arith.mulf %433, %435 : vector<1x256xf32>
      %437 = arith.addf %427, %436 : vector<1x256xf32>
      %438 = vector.extract_strided_slice %40 {offsets = [0, 21], sizes = [1, 256], strides = [1, 1]} : vector<1x358xf32> to vector<1x256xf32>
      %c61 = arith.constant 61 : index
      %439 = memref.load %arg2[%c61] : memref<98xf32, #tpu.memory_space<smem>>
      %440 = vector.broadcast %439 : f32 to vector<1x256xf32>
      %441 = arith.mulf %438, %440 : vector<1x256xf32>
      %442 = arith.addf %432, %441 : vector<1x256xf32>
      %443 = vector.extract_strided_slice %38 {offsets = [0, 37], sizes = [1, 256], strides = [1, 1]} : vector<1x358xf32> to vector<1x256xf32>
      %c19 = arith.constant 19 : index
      %444 = memref.load %arg2[%c19] : memref<98xf32, #tpu.memory_space<smem>>
      %445 = vector.broadcast %444 : f32 to vector<1x256xf32>
      %446 = arith.mulf %443, %445 : vector<1x256xf32>
      %447 = arith.addf %437, %446 : vector<1x256xf32>
      %448 = vector.extract_strided_slice %40 {offsets = [0, 37], sizes = [1, 256], strides = [1, 1]} : vector<1x358xf32> to vector<1x256xf32>
      %c68 = arith.constant 68 : index
      %449 = memref.load %arg2[%c68] : memref<98xf32, #tpu.memory_space<smem>>
      %450 = vector.broadcast %449 : f32 to vector<1x256xf32>
      %451 = arith.mulf %448, %450 : vector<1x256xf32>
      %452 = arith.addf %442, %451 : vector<1x256xf32>
      %453 = vector.extract_strided_slice %38 {offsets = [0, 53], sizes = [1, 256], strides = [1, 1]} : vector<1x358xf32> to vector<1x256xf32>
      %c26 = arith.constant 26 : index
      %454 = memref.load %arg2[%c26] : memref<98xf32, #tpu.memory_space<smem>>
      %455 = vector.broadcast %454 : f32 to vector<1x256xf32>
      %456 = arith.mulf %453, %455 : vector<1x256xf32>
      %457 = arith.addf %447, %456 : vector<1x256xf32>
      %458 = vector.extract_strided_slice %40 {offsets = [0, 53], sizes = [1, 256], strides = [1, 1]} : vector<1x358xf32> to vector<1x256xf32>
      %c75 = arith.constant 75 : index
      %459 = memref.load %arg2[%c75] : memref<98xf32, #tpu.memory_space<smem>>
      %460 = vector.broadcast %459 : f32 to vector<1x256xf32>
      %461 = arith.mulf %458, %460 : vector<1x256xf32>
      %462 = arith.addf %452, %461 : vector<1x256xf32>
      %463 = vector.extract_strided_slice %38 {offsets = [0, 69], sizes = [1, 256], strides = [1, 1]} : vector<1x358xf32> to vector<1x256xf32>
      %c33 = arith.constant 33 : index
      %464 = memref.load %arg2[%c33] : memref<98xf32, #tpu.memory_space<smem>>
      %465 = vector.broadcast %464 : f32 to vector<1x256xf32>
      %466 = arith.mulf %463, %465 : vector<1x256xf32>
      %467 = arith.addf %457, %466 : vector<1x256xf32>
      %468 = vector.extract_strided_slice %40 {offsets = [0, 69], sizes = [1, 256], strides = [1, 1]} : vector<1x358xf32> to vector<1x256xf32>
      %c82 = arith.constant 82 : index
      %469 = memref.load %arg2[%c82] : memref<98xf32, #tpu.memory_space<smem>>
      %470 = vector.broadcast %469 : f32 to vector<1x256xf32>
      %471 = arith.mulf %468, %470 : vector<1x256xf32>
      %472 = arith.addf %462, %471 : vector<1x256xf32>
      %473 = vector.extract_strided_slice %38 {offsets = [0, 85], sizes = [1, 256], strides = [1, 1]} : vector<1x358xf32> to vector<1x256xf32>
      %c40 = arith.constant 40 : index
      %474 = memref.load %arg2[%c40] : memref<98xf32, #tpu.memory_space<smem>>
      %475 = vector.broadcast %474 : f32 to vector<1x256xf32>
      %476 = arith.mulf %473, %475 : vector<1x256xf32>
      %477 = arith.addf %467, %476 : vector<1x256xf32>
      %478 = vector.extract_strided_slice %40 {offsets = [0, 85], sizes = [1, 256], strides = [1, 1]} : vector<1x358xf32> to vector<1x256xf32>
      %c89 = arith.constant 89 : index
      %479 = memref.load %arg2[%c89] : memref<98xf32, #tpu.memory_space<smem>>
      %480 = vector.broadcast %479 : f32 to vector<1x256xf32>
      %481 = arith.mulf %478, %480 : vector<1x256xf32>
      %482 = arith.addf %472, %481 : vector<1x256xf32>
      %483 = vector.extract_strided_slice %38 {offsets = [0, 101], sizes = [1, 256], strides = [1, 1]} : vector<1x358xf32> to vector<1x256xf32>
      %c47 = arith.constant 47 : index
      %484 = memref.load %arg2[%c47] : memref<98xf32, #tpu.memory_space<smem>>
      %485 = vector.broadcast %484 : f32 to vector<1x256xf32>
      %486 = arith.mulf %483, %485 : vector<1x256xf32>
      %487 = arith.addf %477, %486 : vector<1x256xf32>
      %488 = vector.extract_strided_slice %40 {offsets = [0, 101], sizes = [1, 256], strides = [1, 1]} : vector<1x358xf32> to vector<1x256xf32>
      %c96 = arith.constant 96 : index
      %489 = memref.load %arg2[%c96] : memref<98xf32, #tpu.memory_space<smem>>
      %490 = vector.broadcast %489 : f32 to vector<1x256xf32>
      %491 = arith.mulf %488, %490 : vector<1x256xf32>
      %492 = arith.addf %482, %491 : vector<1x256xf32>
      %493 = arith.addf %487, %492 : vector<1x256xf32>
      %c5_62 = arith.constant 5 : index
      %c0_63 = arith.constant 0 : index
      %494 = vector.load %arg3[%c5_62, %c0_63] : memref<7x256xf32, #tpu.memory_space<vmem>>, vector<1x256xf32>
      %495 = arith.mulf %493, %494 : vector<1x256xf32>
      %496 = arith.addf %344, %495 : vector<1x256xf32>
      %cst_64 = arith.constant 0.000000e+00 : f32
      %497 = vector.broadcast %cst_64 : f32 to vector<1x256xf32>
      %cst_65 = arith.constant 0.000000e+00 : f32
      %498 = vector.broadcast %cst_65 : f32 to vector<1x256xf32>
      %499 = vector.extract_strided_slice %38 {offsets = [0, 6], sizes = [1, 256], strides = [1, 1]} : vector<1x358xf32> to vector<1x256xf32>
      %c6 = arith.constant 6 : index
      %500 = memref.load %arg2[%c6] : memref<98xf32, #tpu.memory_space<smem>>
      %501 = vector.broadcast %500 : f32 to vector<1x256xf32>
      %502 = arith.mulf %499, %501 : vector<1x256xf32>
      %503 = arith.addf %497, %502 : vector<1x256xf32>
      %504 = vector.extract_strided_slice %40 {offsets = [0, 6], sizes = [1, 256], strides = [1, 1]} : vector<1x358xf32> to vector<1x256xf32>
      %c55 = arith.constant 55 : index
      %505 = memref.load %arg2[%c55] : memref<98xf32, #tpu.memory_space<smem>>
      %506 = vector.broadcast %505 : f32 to vector<1x256xf32>
      %507 = arith.mulf %504, %506 : vector<1x256xf32>
      %508 = arith.addf %498, %507 : vector<1x256xf32>
      %509 = vector.extract_strided_slice %38 {offsets = [0, 22], sizes = [1, 256], strides = [1, 1]} : vector<1x358xf32> to vector<1x256xf32>
      %c13 = arith.constant 13 : index
      %510 = memref.load %arg2[%c13] : memref<98xf32, #tpu.memory_space<smem>>
      %511 = vector.broadcast %510 : f32 to vector<1x256xf32>
      %512 = arith.mulf %509, %511 : vector<1x256xf32>
      %513 = arith.addf %503, %512 : vector<1x256xf32>
      %514 = vector.extract_strided_slice %40 {offsets = [0, 22], sizes = [1, 256], strides = [1, 1]} : vector<1x358xf32> to vector<1x256xf32>
      %c62 = arith.constant 62 : index
      %515 = memref.load %arg2[%c62] : memref<98xf32, #tpu.memory_space<smem>>
      %516 = vector.broadcast %515 : f32 to vector<1x256xf32>
      %517 = arith.mulf %514, %516 : vector<1x256xf32>
      %518 = arith.addf %508, %517 : vector<1x256xf32>
      %519 = vector.extract_strided_slice %38 {offsets = [0, 38], sizes = [1, 256], strides = [1, 1]} : vector<1x358xf32> to vector<1x256xf32>
      %c20 = arith.constant 20 : index
      %520 = memref.load %arg2[%c20] : memref<98xf32, #tpu.memory_space<smem>>
      %521 = vector.broadcast %520 : f32 to vector<1x256xf32>
      %522 = arith.mulf %519, %521 : vector<1x256xf32>
      %523 = arith.addf %513, %522 : vector<1x256xf32>
      %524 = vector.extract_strided_slice %40 {offsets = [0, 38], sizes = [1, 256], strides = [1, 1]} : vector<1x358xf32> to vector<1x256xf32>
      %c69 = arith.constant 69 : index
      %525 = memref.load %arg2[%c69] : memref<98xf32, #tpu.memory_space<smem>>
      %526 = vector.broadcast %525 : f32 to vector<1x256xf32>
      %527 = arith.mulf %524, %526 : vector<1x256xf32>
      %528 = arith.addf %518, %527 : vector<1x256xf32>
      %529 = vector.extract_strided_slice %38 {offsets = [0, 54], sizes = [1, 256], strides = [1, 1]} : vector<1x358xf32> to vector<1x256xf32>
      %c27 = arith.constant 27 : index
      %530 = memref.load %arg2[%c27] : memref<98xf32, #tpu.memory_space<smem>>
      %531 = vector.broadcast %530 : f32 to vector<1x256xf32>
      %532 = arith.mulf %529, %531 : vector<1x256xf32>
      %533 = arith.addf %523, %532 : vector<1x256xf32>
      %534 = vector.extract_strided_slice %40 {offsets = [0, 54], sizes = [1, 256], strides = [1, 1]} : vector<1x358xf32> to vector<1x256xf32>
      %c76 = arith.constant 76 : index
      %535 = memref.load %arg2[%c76] : memref<98xf32, #tpu.memory_space<smem>>
      %536 = vector.broadcast %535 : f32 to vector<1x256xf32>
      %537 = arith.mulf %534, %536 : vector<1x256xf32>
      %538 = arith.addf %528, %537 : vector<1x256xf32>
      %539 = vector.extract_strided_slice %38 {offsets = [0, 70], sizes = [1, 256], strides = [1, 1]} : vector<1x358xf32> to vector<1x256xf32>
      %c34 = arith.constant 34 : index
      %540 = memref.load %arg2[%c34] : memref<98xf32, #tpu.memory_space<smem>>
      %541 = vector.broadcast %540 : f32 to vector<1x256xf32>
      %542 = arith.mulf %539, %541 : vector<1x256xf32>
      %543 = arith.addf %533, %542 : vector<1x256xf32>
      %544 = vector.extract_strided_slice %40 {offsets = [0, 70], sizes = [1, 256], strides = [1, 1]} : vector<1x358xf32> to vector<1x256xf32>
      %c83 = arith.constant 83 : index
      %545 = memref.load %arg2[%c83] : memref<98xf32, #tpu.memory_space<smem>>
      %546 = vector.broadcast %545 : f32 to vector<1x256xf32>
      %547 = arith.mulf %544, %546 : vector<1x256xf32>
      %548 = arith.addf %538, %547 : vector<1x256xf32>
      %549 = vector.extract_strided_slice %38 {offsets = [0, 86], sizes = [1, 256], strides = [1, 1]} : vector<1x358xf32> to vector<1x256xf32>
      %c41 = arith.constant 41 : index
      %550 = memref.load %arg2[%c41] : memref<98xf32, #tpu.memory_space<smem>>
      %551 = vector.broadcast %550 : f32 to vector<1x256xf32>
      %552 = arith.mulf %549, %551 : vector<1x256xf32>
      %553 = arith.addf %543, %552 : vector<1x256xf32>
      %554 = vector.extract_strided_slice %40 {offsets = [0, 86], sizes = [1, 256], strides = [1, 1]} : vector<1x358xf32> to vector<1x256xf32>
      %c90 = arith.constant 90 : index
      %555 = memref.load %arg2[%c90] : memref<98xf32, #tpu.memory_space<smem>>
      %556 = vector.broadcast %555 : f32 to vector<1x256xf32>
      %557 = arith.mulf %554, %556 : vector<1x256xf32>
      %558 = arith.addf %548, %557 : vector<1x256xf32>
      %559 = vector.extract_strided_slice %38 {offsets = [0, 102], sizes = [1, 256], strides = [1, 1]} : vector<1x358xf32> to vector<1x256xf32>
      %c48 = arith.constant 48 : index
      %560 = memref.load %arg2[%c48] : memref<98xf32, #tpu.memory_space<smem>>
      %561 = vector.broadcast %560 : f32 to vector<1x256xf32>
      %562 = arith.mulf %559, %561 : vector<1x256xf32>
      %563 = arith.addf %553, %562 : vector<1x256xf32>
      %564 = vector.extract_strided_slice %40 {offsets = [0, 102], sizes = [1, 256], strides = [1, 1]} : vector<1x358xf32> to vector<1x256xf32>
      %c97 = arith.constant 97 : index
      %565 = memref.load %arg2[%c97] : memref<98xf32, #tpu.memory_space<smem>>
      %566 = vector.broadcast %565 : f32 to vector<1x256xf32>
      %567 = arith.mulf %564, %566 : vector<1x256xf32>
      %568 = arith.addf %558, %567 : vector<1x256xf32>
      %569 = arith.addf %563, %568 : vector<1x256xf32>
      %c6_66 = arith.constant 6 : index
      %c0_67 = arith.constant 0 : index
      %570 = vector.load %arg3[%c6_66, %c0_67] : memref<7x256xf32, #tpu.memory_space<vmem>>, vector<1x256xf32>
      %571 = arith.mulf %569, %570 : vector<1x256xf32>
      %572 = arith.addf %420, %571 : vector<1x256xf32>
      %573 = arith.addf %572, %496 : vector<1x256xf32>
      %574 = arith.negf %573 : vector<1x256xf32>
      %575 = math.exp %574 : vector<1x256xf32>
      %cst_68 = arith.constant 1.000000e+00 : f32
      %576 = vector.broadcast %cst_68 : f32 to vector<1x256xf32>
      %577 = arith.addf %576, %575 : vector<1x256xf32>
      %578 = arith.divf %576, %577 : vector<1x256xf32>
      %579 = vector.shape_cast %578 : vector<1x256xf32> to vector<1x1x256xf32>
      %c0_69 = arith.constant 0 : index
      %c0_70 = arith.constant 0 : index
      %c0_71 = arith.constant 0 : index
      %580 = vector.load %arg5[%c0_69, %c0_70, %c0_71] : memref<1x1x256xf32, #tpu.memory_space<vmem>>, vector<1x1x256xf32>
      tpu.vector_store %arg5[%c0_69, %c0_70, %c0_71], %579 {strides = array<i32>} : memref<1x1x256xf32, #tpu.memory_space<vmem>>, vector<1x1x256xf32>,
    } else {
    }
    return
  }
  func.func @transform_0(%arg0: i32, %arg1: i32) -> i32 {
    %c0_i32 = arith.constant 0 : i32
    %c0_i32_0 = arith.constant 0 : i32
    return %c0_i32 : i32
  }
  func.func @transform_1(%arg0: i32, %arg1: i32) -> (i32, i32) {
    %c0_i32 = arith.constant 0 : i32
    %c0_i32_0 = arith.constant 0 : i32
    %c0_i32_1 = arith.constant 0 : i32
    return %c0_i32, %c0_i32_0 : i32, i32
  }
  func.func @transform_2(%arg0: i32, %arg1: i32) -> (i32, i32, i32) {
    %c0_i32 = arith.constant 0 : i32
    %c0_i32_0 = arith.constant 0 : i32
    return %arg0, %arg1, %c0_i32 : i32, i32, i32
  }
  func.func @transform_3(%arg0: i32, %arg1: i32) -> (i32, i32, i32) {
    %c0_i32 = arith.constant 0 : i32
    %c0_i32_0 = arith.constant 0 : i32
    %c0_i32_1 = arith.constant 0 : i32
    return %arg0, %c0_i32, %c0_i32_0 : i32, i32, i32
  }
}

</mosaic_0001>

<llo_original>
// kernel: tpu_custom_call.1
$region0: #{tpu_custom_call.1}
  #allocation0 [shape = 'u32[]', space=smem, size = 0x4, offset = 0x4, fixed_abs, tag = 'smem constant byte address 0x4 - core index']
  #allocation1 [shape = 'u32[144,128]{1,0:T(1,128)}', space=vmem, size = 0x12000, scoped, tag = 'internal scratch']
  #allocation2 [shape = 'f32[1,256]{1,0:T(1,128)}', space=vmem, size = 0x400, scoped, tag = 'scratch operand']
  #allocation3 [shape = 'f32[1,256]{1,0:T(1,128)}', space=vmem, size = 0x400, scoped, tag = 'scratch operand']
  #allocation4 [shape = 'f32[2,1,358]{2,1,0:T(1,128)}', space=vmem, size = 0xc00, scoped, tag = 'scratch operand']
  %s0 = inlined_call_operand.hbm [shape: f32[98], index: 0, kind: input, shape index: {}]
  %s1 = inlined_call_operand.hbm [shape: f32[7,256], index: 1, kind: input, shape index: {}]
  %s2 = inlined_call_operand.hbm [shape: f32[2,4,256], index: 2, kind: input, shape index: {}]
  %s3 = inlined_call_operand.hbm [shape: f32[2,1,256], index: 3, kind: output, shape index: {}]
  %s4 = sld [smem:[#allocation0]]
  $region69: #{tpu_custom_call.1} parent=0
    _
  %s6 = ssub.s32 1, %s4
  %s7 = scalar_select 0, %s6, %s4
  $region1: #{tpu_custom_call.1} parent=0
    #allocation5 [shape = 'u8[512]{0}', space=smem, size = 0x200, scoped, tag = 'input window, operand 0, single buffered']
    #allocation6 [shape = 's32[2]{0}', space=sflag, size = 0x8, scoped, tag = 'scoped memory for tpu_custom_call.1']
    #allocation7 [shape = 's32[2]{0}', space=sflag, size = 0x8, scoped, tag = 'scoped memory for tpu_custom_call.1']
    #allocation8 [shape = 's32[2]{0}', space=sflag, size = 0x8, scoped, tag = 'scoped memory for tpu_custom_call.1']
    #allocation9 [shape = 'u8[8192]{0}', space=vmem, size = 0x2000, scoped, tag = 'input window, operand 1, single buffered']
    #allocation10 [shape = 'u8[8192]{0}', space=vmem, size = 0x2000, scoped, tag = 'input window, operand 2']
    #allocation11 [shape = 's32[2]{0}', space=sflag, size = 0x8, scoped, tag = 'scoped memory for tpu_custom_call.1']
    #allocation12 [shape = 'u8[2048]{0}', space=vmem, size = 0x800, scoped, tag = 'output window, operand 0']
    %8 = vsyncpa [#allocation8], 0
    %9 = vsyncpa [#allocation6], 0
    %10 = vsyncpa [#allocation11], 0
    %s11 = scalar_lea.sflag [#allocation11], 1
    %12 = vsyncpa %s11, 0
    %13 = vsyncpa [#allocation7], 0
    %s14 = scalar_lea.sflag [#allocation7], 1
    %15 = vsyncpa %s14, 0
    loop: start=0, step=1, limit=4
    $region2: #{tpu_custom_call.1} parent=1 // loop_pre_header
      _
    $region3: #{tpu_custom_call.1} parent=1 // loop_header
      %s17 = sphi 0, %s21
      %p18 = scmp.ge.s32.totalorder %s17, 4
      %s24 = sphi 0, %s36
      %s25 = sphi 0, %s32
      %s26 = sphi 0, %s24
      %s27 = sphi 0, %s25
      %s28 = sphi 0, %s26
      %s29 = sphi 0, %s27
      %s37 = sphi 0, %s37
      %s39 = sphi 0, %s37
      %s40 = sphi 0, %s39
      %s54 = sphi 0, %s40
      %s58 = sphi 0, %s58
      %s60 = sphi 0, %s58
      %s61 = sphi 0, %s60
      %s75 = sphi 0, %s61
      %s83 = sphi 0, %s85
      %s86 = sphi 0, %s83
      %s87 = sphi 0, %s86
      %s103 = sphi 0, %s87
      %s109 = sphi 0, %s111
      %s112 = sphi 0, %s109
      %s113 = sphi 0, %s112
      %s129 = sphi 0, %s113
    $region4: #{tpu_custom_call.1} parent=1 // loop_header_branch
      %20 = sbr.rel (%p18) target = $region8
    $region5: #{tpu_custom_call.1} parent=1 // loop_body
      %s22 = ssub.s32 %s17, 1
      %s23 = ssub.s32 %s17, 2
      %s30 = sadd.s32 1, %s25
      %p31 = scmp.ge.s32.totalorder %s30, 1
      %s32 = scalar_select %p31, 0, %s30
      %s33 = sadd.s32 1, %s24
      %s34 = scalar_select %p31, %s33, %s24
      %p35 = scmp.ge.s32.totalorder %s34, 2
      %s36 = scalar_select %p35, 0, %s34
      %s38 = sadd.s32 %s37, 1
      %p41 = scmp.eq.s32.totalorder %s17, 1
      %p42 = scmp.ne.s32.totalorder %s37, %s39
      %p43 = scmp.eq.s32.totalorder %s17, 0
      %p44 = por %p42, %p43
      %p45 = scmp.ne.s32.totalorder %s37, %s39
      %p46 = scmp.eq.s32.totalorder %s22, 1
      %p47 = por %p45, %p46
      %p48 = scmp.ne.s32.totalorder %s39, %s40
      %p49 = scmp.eq.s32.totalorder %s22, 0
      %p50 = por %p48, %p49
      %p51 = scmp.ne.s32.totalorder %s39, %s40
      %p52 = scmp.eq.s32.totalorder %s23, 1
      %p53 = por %p51, %p52
      %p55 = scmp.ne.s32.totalorder %s40, %s54
      %p56 = scmp.eq.s32.totalorder %s23, 0
      %p57 = por %p55, %p56
      %s59 = sadd.s32 %s58, 1
      %p62 = scmp.eq.s32.totalorder %s17, 1
      %p63 = scmp.ne.s32.totalorder %s58, %s60
      %p64 = scmp.eq.s32.totalorder %s17, 0
      %p65 = por %p63, %p64
      %p66 = scmp.ne.s32.totalorder %s58, %s60
      %p67 = scmp.eq.s32.totalorder %s22, 1
      %p68 = por %p66, %p67
      %p69 = scmp.ne.s32.totalorder %s60, %s61
      %p70 = scmp.eq.s32.totalorder %s22, 0
      %p71 = por %p69, %p70
      %p72 = scmp.ne.s32.totalorder %s60, %s61
      %p73 = scmp.eq.s32.totalorder %s23, 1
      %p74 = por %p72, %p73
      %p76 = scmp.ne.s32.totalorder %s61, %s75
      %p77 = scmp.eq.s32.totalorder %s23, 0
      %p78 = por %p76, %p77
      %s79 = ssub.s32 %s24, %s36
      %s80 = ssub.s32 %s25, %s32
      %s81 = sor.u32 %s79, %s80
      %p82 = scmp.eq.s32.totalorder %s81, 0
      %s84 = sadd.s32 %s83, 1
      %s85 = scalar_select %p82, %s83, %s84
      %p88 = pneg %p82
      %p89 = scmp.eq.s32.totalorder %s17, 1
      %p90 = por %p88, %p89
      %p91 = scmp.ne.s32.totalorder %s83, %s86
      %p92 = scmp.eq.s32.totalorder %s17, 0
      %p93 = por %p91, %p92
      %p94 = scmp.ne.s32.totalorder %s83, %s86
      %p95 = scmp.eq.s32.totalorder %s22, 1
      %p96 = por %p94, %p95
      %p97 = scmp.ne.s32.totalorder %s86, %s87
      %p98 = scmp.eq.s32.totalorder %s22, 0
      %p99 = por %p97, %p98
      %p100 = scmp.ne.s32.totalorder %s86, %s87
      %p101 = scmp.eq.s32.totalorder %s23, 1
      %p102 = por %p100, %p101
      %p104 = scmp.ne.s32.totalorder %s87, %s103
      %p105 = scmp.eq.s32.totalorder %s23, 0
      %p106 = por %p104, %p105
      %s107 = ssub.s32 %s24, %s36
      %p108 = scmp.eq.s32.totalorder %s107, 0
      %s110 = sadd.s32 %s109, 1
      %s111 = scalar_select %p108, %s109, %s110
      %p114 = pneg %p108
      %p115 = scmp.eq.s32.totalorder %s17, 1
      %p116 = por %p114, %p115
      %p117 = scmp.ne.s32.totalorder %s109, %s112
      %p118 = scmp.eq.s32.totalorder %s17, 0
      %p119 = por %p117, %p118
      %p120 = scmp.ne.s32.totalorder %s109, %s112
      %p121 = scmp.eq.s32.totalorder %s22, 1
      %p122 = por %p120, %p121
      %p123 = scmp.ne.s32.totalorder %s112, %s113
      %p124 = scmp.eq.s32.totalorder %s22, 0
      %p125 = por %p123, %p124
      %p126 = scmp.ne.s32.totalorder %s112, %s113
      %p127 = scmp.eq.s32.totalorder %s23, 1
      %p128 = por %p126, %p127
      %p130 = scmp.ne.s32.totalorder %s113, %s129
      %p131 = scmp.eq.s32.totalorder %s23, 0
      %p132 = por %p130, %p131
      %p133 = scmp.le.s32.totalorder 1, %s17
      %p134 = scmp.lt.s32.totalorder %s17, 3
      %p135 = pnand %p133, %p134
      %p136 = pneg %p135
      // Predicated region
      $region9: #{tpu_custom_call.1} parent=5 // pred_check
        _
      $region10: #{tpu_custom_call.1} parent=5 // pred_check_branch
        %138 = sbr.rel (%p135) target = $region12
      $region11: #{tpu_custom_call.1} parent=5 // pred_region
        %s139 = ssub.s32 %s17, 1
        // Predicated region
        $region13: #{tpu_custom_call.1} parent=11 // pred_check
          %p140 = pneg %p50
        $region14: #{tpu_custom_call.1} parent=11 // pred_check_branch
          %142 = sbr.rel (%p140) target = $region16
        $region15: #{tpu_custom_call.1} parent=11 // pred_region
          %s144 = ssub.s32 16, 16
          %145 = vsyncadd [#allocation8], %s144
          %148 = dma.hbm_to_smem %s0, 16, [#allocation5], [#allocation8]
        $region16: #{tpu_custom_call.1} parent=11 // pred_fallthru
          _
        // Predicated region
        $region17: #{tpu_custom_call.1} parent=11 // pred_check
          %p149 = pneg %p71
        $region18: #{tpu_custom_call.1} parent=11 // pred_check_branch
          %151 = sbr.rel (%p149) target = $region20
        $region19: #{tpu_custom_call.1} parent=11 // pred_region
          %s153 = ssub.s32 256, 256
          %154 = vsyncadd [#allocation6], %s153
          %s156 = sshll.u32 [#allocation9], 4
          %s157 = int_to_ptr.vmem [resolvable:$true] %s156
          %159 = dma.hbm_to_vmem [thread:$0]  %s1, 256, %s157, [#allocation6]
        $region20: #{tpu_custom_call.1} parent=11 // pred_fallthru
          _
      $region12: #{tpu_custom_call.1} parent=5 // pred_fallthru
        _
      %p160 = scmp.lt.s32.totalorder %s17, 2
      // Predicated region
      $region21: #{tpu_custom_call.1} parent=5 // pred_check
        %p161 = pneg %p160
      $region22: #{tpu_custom_call.1} parent=5 // pred_check_branch
        %163 = sbr.rel (%p161) target = $region24
      $region23: #{tpu_custom_call.1} parent=5 // pred_region
        // Predicated region
        $region25: #{tpu_custom_call.1} parent=23 // pred_check
          %p164 = pneg %p93
        $region26: #{tpu_custom_call.1} parent=23 // pred_check_branch
          %166 = sbr.rel (%p164) target = $region28
        $region27: #{tpu_custom_call.1} parent=23 // pred_region
          %s167 = sand.u32 %s83, 1
          %s168 = scalar_lea.sflag [#allocation11], %s167
          %s169 = sand.u32 %s83, 1
          %s170 = smul.addr %s169, 8
          %s171 = scalar_lea.vmem [#allocation10], %s170
          %s173 = ssub.s32 128, 128
          %174 = vsyncadd %s168, %s173
          %s175 = smul.addr %s25, 2
          %s176 = smul.addr %s24, 2
          %s177 = sadd.s32 %s175, %s176
          %s178 = smul.addr %s177, 64
          %s179 = scalar_lea.hbm %s2, %s178
          %s181 = sshll.u32 %s171, 4
          %s182 = int_to_ptr.vmem [resolvable:$true] %s181
          %184 = dma.hbm_to_vmem [thread:$0]  %s179, 128, %s182, %s168
        $region28: #{tpu_custom_call.1} parent=23 // pred_fallthru
          _
      $region24: #{tpu_custom_call.1} parent=5 // pred_fallthru
        _
      %p185 = scmp.le.s32.totalorder 1, %s17
      %p186 = scmp.lt.s32.totalorder %s17, 3
      %p187 = pnand %p185, %p186
      %p188 = pneg %p187
      // Predicated region
      $region29: #{tpu_custom_call.1} parent=5 // pred_check
        _
      $region30: #{tpu_custom_call.1} parent=5 // pred_check_branch
        %190 = sbr.rel (%p187) target = $region32
      $region31: #{tpu_custom_call.1} parent=5 // pred_region
        %s191 = ssub.s32 %s17, 1
        // Predicated region
        $region33: #{tpu_custom_call.1} parent=31 // pred_check
          %p192 = pneg %p50
        $region34: #{tpu_custom_call.1} parent=31 // pred_check_branch
          %194 = sbr.rel (%p192) target = $region36
        $region35: #{tpu_custom_call.1} parent=31 // pred_region
          %195 = dma.done [#allocation8], 16
        $region36: #{tpu_custom_call.1} parent=31 // pred_fallthru
          _
        // Predicated region
        $region37: #{tpu_custom_call.1} parent=31 // pred_check
          %p196 = pneg %p71
        $region38: #{tpu_custom_call.1} parent=31 // pred_check_branch
          %198 = sbr.rel (%p196) target = $region40
        $region39: #{tpu_custom_call.1} parent=31 // pred_region
          %199 = dma.done [#allocation6], 256
        $region40: #{tpu_custom_call.1} parent=31 // pred_fallthru
          _
        %s200 = sand.u32 %s86, 1
        %s201 = scalar_lea.sflag [#allocation11], %s200
        %s202 = sand.u32 %s86, 1
        %s203 = smul.addr %s202, 8
        %s204 = scalar_lea.vmem [#allocation10], %s203
        // Predicated region
        $region41: #{tpu_custom_call.1} parent=31 // pred_check
          %p205 = pneg %p99
        $region42: #{tpu_custom_call.1} parent=31 // pred_check_branch
          %207 = sbr.rel (%p205) target = $region44
        $region43: #{tpu_custom_call.1} parent=31 // pred_region
          %208 = dma.done %s201, 128
        $region44: #{tpu_custom_call.1} parent=31 // pred_fallthru
          _
        %209 = sfence
        %p210 = pneg %p50
        %p211 = pneg %p47
        %p212 = pneg %p71
        %p213 = pneg %p68
        %s214 = sand.u32 %s86, 1
        %s215 = scalar_lea.sflag [#allocation11], %s214
        %s216 = sand.u32 %s86, 1
        %s217 = smul.addr %s216, 8
        %s218 = scalar_lea.vmem [#allocation10], %s217
        %p219 = pneg %p99
        %p220 = pneg %p96
        %p221 = pneg %p125
        %p222 = pneg %p122
        %s223 = sand.u32 %s112, 1
        %s224 = scalar_lea.sflag [#allocation7], %s223
        %s225 = sand.u32 %s112, 1
        %s226 = smul.addr %s225, 2
        %s227 = scalar_lea.vmem [#allocation12], %s226
        %v228 = vld [vmem:[%s204] ss:$4 sm:$0x3]
        %s229 = scalar_lea.vmem %s204, 1 [#allocation10]
        %v230 = vld [vmem:[%s229] ss:$4 sm:$0x3]
        %v231 = vadd.f32 %v228, %v230
        %v232 = vmax.f32 %v228, %v230
        %s233 = scalar_lea.vmem %s204, 2 [#allocation10]
        %v234 = vld [vmem:[%s233] ss:$4 sm:$0x3]
        %v235 = vadd.f32 %v231, %v234
        %v236 = vmax.f32 %v232, %v234
        %s237 = scalar_lea.vmem %s204, 3 [#allocation10]
        %v238 = vld [vmem:[%s237] ss:$4 sm:$0x3]
        %v239 = vadd.f32 %v235, %v238
        %v240 = vmax.f32 %v236, %v238
        %p241 = scmp.eq.s32.totalorder %s27, 0
        // Predicated region
        $region45: #{tpu_custom_call.1} parent=31 // pred_check
          %p242 = pneg %p241
        $region46: #{tpu_custom_call.1} parent=31 // pred_check_branch
          %244 = sbr.rel (%p242) target = $region48
        $region47: #{tpu_custom_call.1} parent=31 // pred_region
          %v245 = vlaneseq
          %vm246 = vcmp.ge.s32.totalorder %v245, 0
          %vm247 = vcmp.lt.s32.totalorder %v245, 256
          %vm248 = vmand %vm246, %vm247
          %249 = vst.msk [vmem:[#allocation2] sm:$0x3] %vm248, %v239
          %250 = vst.msk [vmem:[#allocation3] sm:$0x3] %vm248, %v240
        $region48: #{tpu_custom_call.1} parent=31 // pred_fallthru
          _
        %p251 = scmp.ne.s32.totalorder %s27, 0
        // Predicated region
        $region49: #{tpu_custom_call.1} parent=31 // pred_check
          %p252 = pneg %p251
        $region50: #{tpu_custom_call.1} parent=31 // pred_check_branch
          %254 = sbr.rel (%p252) target = $region52
        $region51: #{tpu_custom_call.1} parent=31 // pred_region
          %v255 = vld [vmem:[#allocation2] sm:$0x3]
          %v256 = vadd.f32 %v255, %v239
          %v257 = vlaneseq
          %vm258 = vcmp.ge.s32.totalorder %v257, 0
          %vm259 = vcmp.lt.s32.totalorder %v257, 256
          %vm260 = vmand %vm258, %vm259
          %261 = vst.msk [vmem:[#allocation2] sm:$0x3] %vm260, %v256
          %v262 = vld [vmem:[#allocation3] sm:$0x3]
          %v263 = vmax.f32 %v262, %v240
          %264 = vst.msk [vmem:[#allocation3] sm:$0x3] %vm260, %v263
        $region52: #{tpu_custom_call.1} parent=31 // pred_fallthru
          _
        // Predicated region
        $region53: #{tpu_custom_call.1} parent=31 // pred_check
          %p265 = pneg %p241
        $region54: #{tpu_custom_call.1} parent=31 // pred_check_branch
          %267 = sbr.rel (%p265) target = $region56
        $region55: #{tpu_custom_call.1} parent=31 // pred_region
          %v268 = vld [vmem:[#allocation2] sm:$0x3]
          %v269 = vmul.f32 %v268, 0.25
          %v270 = vld [vmem:[#allocation3] sm:$0x3]
          %v271 = vlaneseq
          %vm272 = vcmp.ge.s32.totalorder %v271, 0
          %vm273 = vcmp.lt.s32.totalorder %v271, 51
          %vm274 = vmand %vm272, %vm273
          %275 = vst.msk [vmem:[#allocation4] sm:$0x1] %vm274, 0.0
          %276 = vst.msk [vmem:[#allocation4 + $0x3] sm:$0x1] %vm274, 0.0
          %vm277 = vcmp.ge.s32.totalorder %v271, 51
          %vm278 = vcmp.lt.s32.totalorder %v271, 102
          %vm279 = vmand %vm277, %vm278
          %280 = vst.msk [vmem:[#allocation4 + $0x2] sm:$0x1] %vm279, 0.0
          %281 = vst.msk [vmem:[#allocation4 + $0x5] sm:$0x1] %vm279, 0.0
          %283 = vrot.lane.b32.xlu0 %v269, 51
          %v284 = vpop.permute.xlu0 %283
          %v285 = vrot.slane %v284, 7
          %vm286 = vcmask 416768
          %v287 = vsel %vm286, %v285, %v284
          %vm289 = vcmp.lt.s32.totalorder %v271, 307
          %vm290 = vmand %vm277, %vm289
          %291 = vst.msk [vmem:[#allocation4] sm:$0x7] %vm290, %v287
          %293 = vrot.lane.b32.xlu0 %v270, 51
          %v294 = vpop.permute.xlu0 %293
          %v295 = vrot.slane %v294, 7
          %v296 = vsel %vm286, %v295, %v294
          %s298 = scalar_lea.vmem [#allocation4], 3
          %299 = vst.msk [vmem:[%s298] sm:$0x7] %vm290, %v296
          %v300 = vld [vmem:[#allocation4] sm:$0x7]
          %v301 = vld [vmem:[%s298] sm:$0x7]
          %s302 = sld [smem:[#allocation5]]
          %v303 = vstv %s302
          %v304 = vmul.f32 %v300, %v303
          %v305 = vadd.f32 %v304, 0.0
          %s306 = sld [smem:[#allocation5 + $0x31]]
          %v307 = vstv %s306
          %v308 = vmul.f32 %v301, %v307
          %v309 = vadd.f32 %v308, 0.0
          %s310 = sld [smem:[#allocation5 + $0x7]]
          %v311 = vstv %s310
          %v312 = vmul.f32 %v300, %v311
          %314 = vrot.lane.b32.xlu0 %v312, 112
          %v315 = vpop.permute.xlu0 %314
          %v316 = vrot.slane %v315, 1
          %vm317 = vcmask 916480
          %v318 = vsel %vm317, %v315, %v316
          %v320 = vadd.f32 %v305, %v318
          %s321 = sld [smem:[#allocation5 + $0x38]]
          %v322 = vstv %s321
          %v323 = vmul.f32 %v301, %v322
          %325 = vrot.lane.b32.xlu0 %v323, 112
          %v326 = vpop.permute.xlu0 %325
          %v327 = vrot.slane %v326, 1
          %v328 = vsel %vm317, %v326, %v327
          %v330 = vadd.f32 %v309, %v328
          %s331 = sld [smem:[#allocation5 + $0xe]]
          %v332 = vstv %s331
          %v333 = vmul.f32 %v300, %v332
          %335 = vrot.lane.b32.xlu0 %v333, 96
          %v336 = vpop.permute.xlu0 %335
          %v337 = vrot.slane %v336, 1
          %vm338 = vcmask 785408
          %v339 = vsel %vm338, %v336, %v337
          %v341 = vadd.f32 %v320, %v339
          %s342 = sld [smem:[#allocation5 + $0x3f]]
          %v343 = vstv %s342
          %v344 = vmul.f32 %v301, %v343
          %346 = vrot.lane.b32.xlu0 %v344, 96
          %v347 = vpop.permute.xlu0 %346
          %v348 = vrot.slane %v347, 1
          %v349 = vsel %vm338, %v347, %v348
          %v351 = vadd.f32 %v330, %v349
          %s352 = sld [smem:[#allocation5 + $0x15]]
          %v353 = vstv %s352
          %v354 = vmul.f32 %v300, %v353
          %356 = vrot.lane.b32.xlu0 %v354, 80
          %v357 = vpop.permute.xlu0 %356
          %v358 = vrot.slane %v357, 1
          %vm359 = vcmask 654336
          %v360 = vsel %vm359, %v357, %v358
          %v362 = vadd.f32 %v341, %v360
          %s363 = sld [smem:[#allocation5 + $0x46]]
          %v364 = vstv %s363
          %v365 = vmul.f32 %v301, %v364
          %367 = vrot.lane.b32.xlu0 %v365, 80
          %v368 = vpop.permute.xlu0 %367
          %v369 = vrot.slane %v368, 1
          %v370 = vsel %vm359, %v368, %v369
          %v372 = vadd.f32 %v351, %v370
          %s373 = sld [smem:[#allocation5 + $0x1c]]
          %v374 = vstv %s373
          %v375 = vmul.f32 %v300, %v374
          %377 = vrot.lane.b32.xlu0 %v375, 64
          %v378 = vpop.permute.xlu0 %377
          %v379 = vrot.slane %v378, 1
          %vm380 = vcmask 523264
          %v381 = vsel %vm380, %v378, %v379
          %v383 = vadd.f32 %v362, %v381
          %s384 = sld [smem:[#allocation5 + $0x4d]]
          %v385 = vstv %s384
          %v386 = vmul.f32 %v301, %v385
          %388 = vrot.lane.b32.xlu0 %v386, 64
          %v389 = vpop.permute.xlu0 %388
          %v390 = vrot.slane %v389, 1
          %v391 = vsel %vm380, %v389, %v390
          %v393 = vadd.f32 %v372, %v391
          %s394 = sld [smem:[#allocation5 + $0x23]]
          %v395 = vstv %s394
          %v396 = vmul.f32 %v300, %v395
          %398 = vrot.lane.b32.xlu0 %v396, 48
          %v399 = vpop.permute.xlu0 %398
          %v400 = vrot.slane %v399, 1
          %vm401 = vcmask 392192
          %v402 = vsel %vm401, %v399, %v400
          %v404 = vadd.f32 %v383, %v402
          %s405 = sld [smem:[#allocation5 + $0x54]]
          %v406 = vstv %s405
          %v407 = vmul.f32 %v301, %v406
          %409 = vrot.lane.b32.xlu0 %v407, 48
          %v410 = vpop.permute.xlu0 %409
          %v411 = vrot.slane %v410, 1
          %v412 = vsel %vm401, %v410, %v411
          %v414 = vadd.f32 %v393, %v412
          %s415 = sld [smem:[#allocation5 + $0x2a]]
          %v416 = vstv %s415
          %v417 = vmul.f32 %v300, %v416
          %419 = vrot.lane.b32.xlu0 %v417, 32
          %v420 = vpop.permute.xlu0 %419
          %v421 = vrot.slane %v420, 1
          %vm422 = vcmask 261120
          %v423 = vsel %vm422, %v420, %v421
          %v425 = vadd.f32 %v404, %v423
          %s426 = sld [smem:[#allocation5 + $0x5b]]
          %v427 = vstv %s426
          %v428 = vmul.f32 %v301, %v427
          %430 = vrot.lane.b32.xlu0 %v428, 32
          %v431 = vpop.permute.xlu0 %430
          %v432 = vrot.slane %v431, 1
          %v433 = vsel %vm422, %v431, %v432
          %v435 = vadd.f32 %v414, %v433
          %v436 = vadd.f32 %v425, %v435
          %v437 = vld [vmem:[#allocation9] ss:$8 sm:$0x3]
          %v438 = vmul.f32 %v436, %v437
          %v439 = vadd.f32 %v438, 0.0
          %s440 = sld [smem:[#allocation5 + $0x1]]
          %v441 = vstv %s440
          %v442 = vmul.f32 %v300, %v441
          %v443 = vadd.f32 %v442, 0.0
          %s444 = sld [smem:[#allocation5 + $0x32]]
          %v445 = vstv %s444
          %v446 = vmul.f32 %v301, %v445
          %v447 = vadd.f32 %v446, 0.0
          %s448 = sld [smem:[#allocation5 + $0x8]]
          %v449 = vstv %s448
          %v450 = vmul.f32 %v300, %v449
          %452 = vrot.lane.b32.xlu0 %v450, 112
          %v453 = vpop.permute.xlu0 %452
          %v454 = vrot.slane %v453, 1
          %v455 = vsel %vm317, %v453, %v454
          %v457 = vadd.f32 %v443, %v455
          %s458 = sld [smem:[#allocation5 + $0x39]]
          %v459 = vstv %s458
          %v460 = vmul.f32 %v301, %v459
          %462 = vrot.lane.b32.xlu0 %v460, 112
          %v463 = vpop.permute.xlu0 %462
          %v464 = vrot.slane %v463, 1
          %v465 = vsel %vm317, %v463, %v464
          %v467 = vadd.f32 %v447, %v465
          %s468 = sld [smem:[#allocation5 + $0xf]]
          %v469 = vstv %s468
          %v470 = vmul.f32 %v300, %v469
          %472 = vrot.lane.b32.xlu0 %v470, 96
          %v473 = vpop.permute.xlu0 %472
          %v474 = vrot.slane %v473, 1
          %v475 = vsel %vm338, %v473, %v474
          %v477 = vadd.f32 %v457, %v475
          %s478 = sld [smem:[#allocation5 + $0x40]]
          %v479 = vstv %s478
          %v480 = vmul.f32 %v301, %v479
          %482 = vrot.lane.b32.xlu0 %v480, 96
          %v483 = vpop.permute.xlu0 %482
          %v484 = vrot.slane %v483, 1
          %v485 = vsel %vm338, %v483, %v484
          %v487 = vadd.f32 %v467, %v485
          %s488 = sld [smem:[#allocation5 + $0x16]]
          %v489 = vstv %s488
          %v490 = vmul.f32 %v300, %v489
          %492 = vrot.lane.b32.xlu0 %v490, 80
          %v493 = vpop.permute.xlu0 %492
          %v494 = vrot.slane %v493, 1
          %v495 = vsel %vm359, %v493, %v494
          %v497 = vadd.f32 %v477, %v495
          %s498 = sld [smem:[#allocation5 + $0x47]]
          %v499 = vstv %s498
          %v500 = vmul.f32 %v301, %v499
          %502 = vrot.lane.b32.xlu0 %v500, 80
          %v503 = vpop.permute.xlu0 %502
          %v504 = vrot.slane %v503, 1
          %v505 = vsel %vm359, %v503, %v504
          %v507 = vadd.f32 %v487, %v505
          %s508 = sld [smem:[#allocation5 + $0x1d]]
          %v509 = vstv %s508
          %v510 = vmul.f32 %v300, %v509
          %512 = vrot.lane.b32.xlu0 %v510, 64
          %v513 = vpop.permute.xlu0 %512
          %v514 = vrot.slane %v513, 1
          %v515 = vsel %vm380, %v513, %v514
          %v517 = vadd.f32 %v497, %v515
          %s518 = sld [smem:[#allocation5 + $0x4e]]
          %v519 = vstv %s518
          %v520 = vmul.f32 %v301, %v519
          %522 = vrot.lane.b32.xlu0 %v520, 64
          %v523 = vpop.permute.xlu0 %522
          %v524 = vrot.slane %v523, 1
          %v525 = vsel %vm380, %v523, %v524
          %v527 = vadd.f32 %v507, %v525
          %s528 = sld [smem:[#allocation5 + $0x24]]
          %v529 = vstv %s528
          %v530 = vmul.f32 %v300, %v529
          %532 = vrot.lane.b32.xlu0 %v530, 48
          %v533 = vpop.permute.xlu0 %532
          %v534 = vrot.slane %v533, 1
          %v535 = vsel %vm401, %v533, %v534
          %v537 = vadd.f32 %v517, %v535
          %s538 = sld [smem:[#allocation5 + $0x55]]
          %v539 = vstv %s538
          %v540 = vmul.f32 %v301, %v539
          %542 = vrot.lane.b32.xlu0 %v540, 48
          %v543 = vpop.permute.xlu0 %542
          %v544 = vrot.slane %v543, 1
          %v545 = vsel %vm401, %v543, %v544
          %v547 = vadd.f32 %v527, %v545
          %s548 = sld [smem:[#allocation5 + $0x2b]]
          %v549 = vstv %s548
          %v550 = vmul.f32 %v300, %v549
          %552 = vrot.lane.b32.xlu0 %v550, 32
          %v553 = vpop.permute.xlu0 %552
          %v554 = vrot.slane %v553, 1
          %v555 = vsel %vm422, %v553, %v554
          %v557 = vadd.f32 %v537, %v555
          %s558 = sld [smem:[#allocation5 + $0x5c]]
          %v559 = vstv %s558
          %v560 = vmul.f32 %v301, %v559
          %562 = vrot.lane.b32.xlu0 %v560, 32
          %v563 = vpop.permute.xlu0 %562
          %v564 = vrot.slane %v563, 1
          %v565 = vsel %vm422, %v563, %v564
          %v567 = vadd.f32 %v547, %v565
          %v568 = vadd.f32 %v557, %v567
          %s569 = scalar_lea.vmem [#allocation9], 1
          %v570 = vld [vmem:[%s569] ss:$8 sm:$0x3]
          %572 = vrot.lane.b32.xlu0 %v570, 1
          %v573 = vpop.permute.xlu0 %572
          %v574 = vrot.slane %v573, 7
          %vm575 = vcmask 7168
          %v576 = vsel %vm575, %v574, %v573
          %v578 = vmul.f32 %v568, %v576
          %v579 = vadd.f32 %v578, 0.0
          %s580 = sld [smem:[#allocation5 + $0x2]]
          %v581 = vstv %s580
          %v582 = vmul.f32 %v300, %v581
          %v583 = vadd.f32 %v582, 0.0
          %s584 = sld [smem:[#allocation5 + $0x33]]
          %v585 = vstv %s584
          %v586 = vmul.f32 %v301, %v585
          %v587 = vadd.f32 %v586, 0.0
          %s588 = sld [smem:[#allocation5 + $0x9]]
          %v589 = vstv %s588
          %v590 = vmul.f32 %v300, %v589
          %592 = vrot.lane.b32.xlu0 %v590, 112
          %v593 = vpop.permute.xlu0 %592
          %v594 = vrot.slane %v593, 1
          %v595 = vsel %vm317, %v593, %v594
          %v597 = vadd.f32 %v583, %v595
          %s598 = sld [smem:[#allocation5 + $0x3a]]
          %v599 = vstv %s598
          %v600 = vmul.f32 %v301, %v599
          %602 = vrot.lane.b32.xlu0 %v600, 112
          %v603 = vpop.permute.xlu0 %602
          %v604 = vrot.slane %v603, 1
          %v605 = vsel %vm317, %v603, %v604
          %v607 = vadd.f32 %v587, %v605
          %s608 = sld [smem:[#allocation5 + $0x10]]
          %v609 = vstv %s608
          %v610 = vmul.f32 %v300, %v609
          %612 = vrot.lane.b32.xlu0 %v610, 96
          %v613 = vpop.permute.xlu0 %612
          %v614 = vrot.slane %v613, 1
          %v615 = vsel %vm338, %v613, %v614
          %v617 = vadd.f32 %v597, %v615
          %s618 = sld [smem:[#allocation5 + $0x41]]
          %v619 = vstv %s618
          %v620 = vmul.f32 %v301, %v619
          %622 = vrot.lane.b32.xlu0 %v620, 96
          %v623 = vpop.permute.xlu0 %622
          %v624 = vrot.slane %v623, 1
          %v625 = vsel %vm338, %v623, %v624
          %v627 = vadd.f32 %v607, %v625
          %s628 = sld [smem:[#allocation5 + $0x17]]
          %v629 = vstv %s628
          %v630 = vmul.f32 %v300, %v629
          %632 = vrot.lane.b32.xlu0 %v630, 80
          %v633 = vpop.permute.xlu0 %632
          %v634 = vrot.slane %v633, 1
          %v635 = vsel %vm359, %v633, %v634
          %v637 = vadd.f32 %v617, %v635
          %s638 = sld [smem:[#allocation5 + $0x48]]
          %v639 = vstv %s638
          %v640 = vmul.f32 %v301, %v639
          %642 = vrot.lane.b32.xlu0 %v640, 80
          %v643 = vpop.permute.xlu0 %642
          %v644 = vrot.slane %v643, 1
          %v645 = vsel %vm359, %v643, %v644
          %v647 = vadd.f32 %v627, %v645
          %s648 = sld [smem:[#allocation5 + $0x1e]]
          %v649 = vstv %s648
          %v650 = vmul.f32 %v300, %v649
          %652 = vrot.lane.b32.xlu0 %v650, 64
          %v653 = vpop.permute.xlu0 %652
          %v654 = vrot.slane %v653, 1
          %v655 = vsel %vm380, %v653, %v654
          %v657 = vadd.f32 %v637, %v655
          %s658 = sld [smem:[#allocation5 + $0x4f]]
          %v659 = vstv %s658
          %v660 = vmul.f32 %v301, %v659
          %662 = vrot.lane.b32.xlu0 %v660, 64
          %v663 = vpop.permute.xlu0 %662
          %v664 = vrot.slane %v663, 1
          %v665 = vsel %vm380, %v663, %v664
          %v667 = vadd.f32 %v647, %v665
          %s668 = sld [smem:[#allocation5 + $0x25]]
          %v669 = vstv %s668
          %v670 = vmul.f32 %v300, %v669
          %672 = vrot.lane.b32.xlu0 %v670, 48
          %v673 = vpop.permute.xlu0 %672
          %v674 = vrot.slane %v673, 1
          %v675 = vsel %vm401, %v673, %v674
          %v677 = vadd.f32 %v657, %v675
          %s678 = sld [smem:[#allocation5 + $0x56]]
          %v679 = vstv %s678
          %v680 = vmul.f32 %v301, %v679
          %682 = vrot.lane.b32.xlu0 %v680, 48
          %v683 = vpop.permute.xlu0 %682
          %v684 = vrot.slane %v683, 1
          %v685 = vsel %vm401, %v683, %v684
          %v687 = vadd.f32 %v667, %v685
          %s688 = sld [smem:[#allocation5 + $0x2c]]
          %v689 = vstv %s688
          %v690 = vmul.f32 %v300, %v689
          %692 = vrot.lane.b32.xlu0 %v690, 32
          %v693 = vpop.permute.xlu0 %692
          %v694 = vrot.slane %v693, 1
          %v695 = vsel %vm422, %v693, %v694
          %v697 = vadd.f32 %v677, %v695
          %s698 = sld [smem:[#allocation5 + $0x5d]]
          %v699 = vstv %s698
          %v700 = vmul.f32 %v301, %v699
          %702 = vrot.lane.b32.xlu0 %v700, 32
          %v703 = vpop.permute.xlu0 %702
          %v704 = vrot.slane %v703, 1
          %v705 = vsel %vm422, %v703, %v704
          %v707 = vadd.f32 %v687, %v705
          %v708 = vadd.f32 %v697, %v707
          %s709 = scalar_lea.vmem [#allocation9], 2
          %v710 = vld [vmem:[%s709] ss:$8 sm:$0x3]
          %712 = vrot.lane.b32.xlu0 %v710, 2
          %v713 = vpop.permute.xlu0 %712
          %v714 = vrot.slane %v713, 7
          %vm715 = vcmask 15360
          %v716 = vsel %vm715, %v714, %v713
          %v718 = vmul.f32 %v708, %v716
          %720 = vrot.lane.b32.xlu0 %v718, 126
          %v721 = vpop.permute.xlu0 %720
          %v722 = vrot.slane %v721, 1
          %vm723 = vcmask 1031168
          %v724 = vsel %vm723, %v721, %v722
          %v726 = vadd.f32 %v439, %v724
          %s727 = sld [smem:[#allocation5 + $0x3]]
          %v728 = vstv %s727
          %v729 = vmul.f32 %v300, %v728
          %v730 = vadd.f32 %v729, 0.0
          %s731 = sld [smem:[#allocation5 + $0x34]]
          %v732 = vstv %s731
          %v733 = vmul.f32 %v301, %v732
          %v734 = vadd.f32 %v733, 0.0
          %s735 = sld [smem:[#allocation5 + $0xa]]
          %v736 = vstv %s735
          %v737 = vmul.f32 %v300, %v736
          %739 = vrot.lane.b32.xlu0 %v737, 112
          %v740 = vpop.permute.xlu0 %739
          %v741 = vrot.slane %v740, 1
          %v742 = vsel %vm317, %v740, %v741
          %v744 = vadd.f32 %v730, %v742
          %s745 = sld [smem:[#allocation5 + $0x3b]]
          %v746 = vstv %s745
          %v747 = vmul.f32 %v301, %v746
          %749 = vrot.lane.b32.xlu0 %v747, 112
          %v750 = vpop.permute.xlu0 %749
          %v751 = vrot.slane %v750, 1
          %v752 = vsel %vm317, %v750, %v751
          %v754 = vadd.f32 %v734, %v752
          %s755 = sld [smem:[#allocation5 + $0x11]]
          %v756 = vstv %s755
          %v757 = vmul.f32 %v300, %v756
          %759 = vrot.lane.b32.xlu0 %v757, 96
          %v760 = vpop.permute.xlu0 %759
          %v761 = vrot.slane %v760, 1
          %v762 = vsel %vm338, %v760, %v761
          %v764 = vadd.f32 %v744, %v762
          %s765 = sld [smem:[#allocation5 + $0x42]]
          %v766 = vstv %s765
          %v767 = vmul.f32 %v301, %v766
          %769 = vrot.lane.b32.xlu0 %v767, 96
          %v770 = vpop.permute.xlu0 %769
          %v771 = vrot.slane %v770, 1
          %v772 = vsel %vm338, %v770, %v771
          %v774 = vadd.f32 %v754, %v772
          %s775 = sld [smem:[#allocation5 + $0x18]]
          %v776 = vstv %s775
          %v777 = vmul.f32 %v300, %v776
          %779 = vrot.lane.b32.xlu0 %v777, 80
          %v780 = vpop.permute.xlu0 %779
          %v781 = vrot.slane %v780, 1
          %v782 = vsel %vm359, %v780, %v781
          %v784 = vadd.f32 %v764, %v782
          %s785 = sld [smem:[#allocation5 + $0x49]]
          %v786 = vstv %s785
          %v787 = vmul.f32 %v301, %v786
          %789 = vrot.lane.b32.xlu0 %v787, 80
          %v790 = vpop.permute.xlu0 %789
          %v791 = vrot.slane %v790, 1
          %v792 = vsel %vm359, %v790, %v791
          %v794 = vadd.f32 %v774, %v792
          %s795 = sld [smem:[#allocation5 + $0x1f]]
          %v796 = vstv %s795
          %v797 = vmul.f32 %v300, %v796
          %799 = vrot.lane.b32.xlu0 %v797, 64
          %v800 = vpop.permute.xlu0 %799
          %v801 = vrot.slane %v800, 1
          %v802 = vsel %vm380, %v800, %v801
          %v804 = vadd.f32 %v784, %v802
          %s805 = sld [smem:[#allocation5 + $0x50]]
          %v806 = vstv %s805
          %v807 = vmul.f32 %v301, %v806
          %809 = vrot.lane.b32.xlu0 %v807, 64
          %v810 = vpop.permute.xlu0 %809
          %v811 = vrot.slane %v810, 1
          %v812 = vsel %vm380, %v810, %v811
          %v814 = vadd.f32 %v794, %v812
          %s815 = sld [smem:[#allocation5 + $0x26]]
          %v816 = vstv %s815
          %v817 = vmul.f32 %v300, %v816
          %819 = vrot.lane.b32.xlu0 %v817, 48
          %v820 = vpop.permute.xlu0 %819
          %v821 = vrot.slane %v820, 1
          %v822 = vsel %vm401, %v820, %v821
          %v824 = vadd.f32 %v804, %v822
          %s825 = sld [smem:[#allocation5 + $0x57]]
          %v826 = vstv %s825
          %v827 = vmul.f32 %v301, %v826
          %829 = vrot.lane.b32.xlu0 %v827, 48
          %v830 = vpop.permute.xlu0 %829
          %v831 = vrot.slane %v830, 1
          %v832 = vsel %vm401, %v830, %v831
          %v834 = vadd.f32 %v814, %v832
          %s835 = sld [smem:[#allocation5 + $0x2d]]
          %v836 = vstv %s835
          %v837 = vmul.f32 %v300, %v836
          %839 = vrot.lane.b32.xlu0 %v837, 32
          %v840 = vpop.permute.xlu0 %839
          %v841 = vrot.slane %v840, 1
          %v842 = vsel %vm422, %v840, %v841
          %v844 = vadd.f32 %v824, %v842
          %s845 = sld [smem:[#allocation5 + $0x5e]]
          %v846 = vstv %s845
          %v847 = vmul.f32 %v301, %v846
          %849 = vrot.lane.b32.xlu0 %v847, 32
          %v850 = vpop.permute.xlu0 %849
          %v851 = vrot.slane %v850, 1
          %v852 = vsel %vm422, %v850, %v851
          %v854 = vadd.f32 %v834, %v852
          %v855 = vadd.f32 %v844, %v854
          %857 = vrot.lane.b32.xlu0 %v855, 126
          %v858 = vpop.permute.xlu0 %857
          %v859 = vrot.slane %v858, 1
          %v860 = vsel %vm723, %v858, %v859
          %v862 = vadd.f32 %v579, %v860
          %s863 = sld [smem:[#allocation5 + $0x4]]
          %v864 = vstv %s863
          %v865 = vmul.f32 %v300, %v864
          %v866 = vadd.f32 %v865, 0.0
          %s867 = sld [smem:[#allocation5 + $0x35]]
          %v868 = vstv %s867
          %v869 = vmul.f32 %v301, %v868
          %v870 = vadd.f32 %v869, 0.0
          %s871 = sld [smem:[#allocation5 + $0xb]]
          %v872 = vstv %s871
          %v873 = vmul.f32 %v300, %v872
          %875 = vrot.lane.b32.xlu0 %v873, 112
          %v876 = vpop.permute.xlu0 %875
          %v877 = vrot.slane %v876, 1
          %v878 = vsel %vm317, %v876, %v877
          %v880 = vadd.f32 %v866, %v878
          %s881 = sld [smem:[#allocation5 + $0x3c]]
          %v882 = vstv %s881
          %v883 = vmul.f32 %v301, %v882
          %885 = vrot.lane.b32.xlu0 %v883, 112
          %v886 = vpop.permute.xlu0 %885
          %v887 = vrot.slane %v886, 1
          %v888 = vsel %vm317, %v886, %v887
          %v890 = vadd.f32 %v870, %v888
          %s891 = sld [smem:[#allocation5 + $0x12]]
          %v892 = vstv %s891
          %v893 = vmul.f32 %v300, %v892
          %895 = vrot.lane.b32.xlu0 %v893, 96
          %v896 = vpop.permute.xlu0 %895
          %v897 = vrot.slane %v896, 1
          %v898 = vsel %vm338, %v896, %v897
          %v900 = vadd.f32 %v880, %v898
          %s901 = sld [smem:[#allocation5 + $0x43]]
          %v902 = vstv %s901
          %v903 = vmul.f32 %v301, %v902
          %905 = vrot.lane.b32.xlu0 %v903, 96
          %v906 = vpop.permute.xlu0 %905
          %v907 = vrot.slane %v906, 1
          %v908 = vsel %vm338, %v906, %v907
          %v910 = vadd.f32 %v890, %v908
          %s911 = sld [smem:[#allocation5 + $0x19]]
          %v912 = vstv %s911
          %v913 = vmul.f32 %v300, %v912
          %915 = vrot.lane.b32.xlu0 %v913, 80
          %v916 = vpop.permute.xlu0 %915
          %v917 = vrot.slane %v916, 1
          %v918 = vsel %vm359, %v916, %v917
          %v920 = vadd.f32 %v900, %v918
          %s921 = sld [smem:[#allocation5 + $0x4a]]
          %v922 = vstv %s921
          %v923 = vmul.f32 %v301, %v922
          %925 = vrot.lane.b32.xlu0 %v923, 80
          %v926 = vpop.permute.xlu0 %925
          %v927 = vrot.slane %v926, 1
          %v928 = vsel %vm359, %v926, %v927
          %v930 = vadd.f32 %v910, %v928
          %s931 = sld [smem:[#allocation5 + $0x20]]
          %v932 = vstv %s931
          %v933 = vmul.f32 %v300, %v932
          %935 = vrot.lane.b32.xlu0 %v933, 64
          %v936 = vpop.permute.xlu0 %935
          %v937 = vrot.slane %v936, 1
          %v938 = vsel %vm380, %v936, %v937
          %v940 = vadd.f32 %v920, %v938
          %s941 = sld [smem:[#allocation5 + $0x51]]
          %v942 = vstv %s941
          %v943 = vmul.f32 %v301, %v942
          %945 = vrot.lane.b32.xlu0 %v943, 64
          %v946 = vpop.permute.xlu0 %945
          %v947 = vrot.slane %v946, 1
          %v948 = vsel %vm380, %v946, %v947
          %v950 = vadd.f32 %v930, %v948
          %s951 = sld [smem:[#allocation5 + $0x27]]
          %v952 = vstv %s951
          %v953 = vmul.f32 %v300, %v952
          %955 = vrot.lane.b32.xlu0 %v953, 48
          %v956 = vpop.permute.xlu0 %955
          %v957 = vrot.slane %v956, 1
          %v958 = vsel %vm401, %v956, %v957
          %v960 = vadd.f32 %v940, %v958
          %s961 = sld [smem:[#allocation5 + $0x58]]
          %v962 = vstv %s961
          %v963 = vmul.f32 %v301, %v962
          %965 = vrot.lane.b32.xlu0 %v963, 48
          %v966 = vpop.permute.xlu0 %965
          %v967 = vrot.slane %v966, 1
          %v968 = vsel %vm401, %v966, %v967
          %v970 = vadd.f32 %v950, %v968
          %s971 = sld [smem:[#allocation5 + $0x2e]]
          %v972 = vstv %s971
          %v973 = vmul.f32 %v300, %v972
          %975 = vrot.lane.b32.xlu0 %v973, 32
          %v976 = vpop.permute.xlu0 %975
          %v977 = vrot.slane %v976, 1
          %v978 = vsel %vm422, %v976, %v977
          %v980 = vadd.f32 %v960, %v978
          %s981 = sld [smem:[#allocation5 + $0x5f]]
          %v982 = vstv %s981
          %v983 = vmul.f32 %v301, %v982
          %985 = vrot.lane.b32.xlu0 %v983, 32
          %v986 = vpop.permute.xlu0 %985
          %v987 = vrot.slane %v986, 1
          %v988 = vsel %vm422, %v986, %v987
          %v990 = vadd.f32 %v970, %v988
          %v991 = vadd.f32 %v980, %v990
          %s992 = scalar_lea.vmem [#allocation9], 4
          %v993 = vld [vmem:[%s992] ss:$8 sm:$0x3]
          %995 = vrot.lane.b32.xlu0 %v993, 4
          %v996 = vpop.permute.xlu0 %995
          %v997 = vrot.slane %v996, 7
          %vm998 = vcmask 31744
          %v999 = vsel %vm998, %v997, %v996
          %v1001 = vmul.f32 %v991, %v999
          %1003 = vrot.lane.b32.xlu0 %v1001, 124
          %v1004 = vpop.permute.xlu0 %1003
          %v1005 = vrot.slane %v1004, 1
          %vm1006 = vcmask 1014784
          %v1007 = vsel %vm1006, %v1004, %v1005
          %v1009 = vadd.f32 %v726, %v1007
          %s1010 = sld [smem:[#allocation5 + $0x5]]
          %v1011 = vstv %s1010
          %v1012 = vmul.f32 %v300, %v1011
          %v1013 = vadd.f32 %v1012, 0.0
          %s1014 = sld [smem:[#allocation5 + $0x36]]
          %v1015 = vstv %s1014
          %v1016 = vmul.f32 %v301, %v1015
          %v1017 = vadd.f32 %v1016, 0.0
          %s1018 = sld [smem:[#allocation5 + $0xc]]
          %v1019 = vstv %s1018
          %v1020 = vmul.f32 %v300, %v1019
          %1022 = vrot.lane.b32.xlu0 %v1020, 112
          %v1023 = vpop.permute.xlu0 %1022
          %v1024 = vrot.slane %v1023, 1
          %v1025 = vsel %vm317, %v1023, %v1024
          %v1027 = vadd.f32 %v1013, %v1025
          %s1028 = sld [smem:[#allocation5 + $0x3d]]
          %v1029 = vstv %s1028
          %v1030 = vmul.f32 %v301, %v1029
          %1032 = vrot.lane.b32.xlu0 %v1030, 112
          %v1033 = vpop.permute.xlu0 %1032
          %v1034 = vrot.slane %v1033, 1
          %v1035 = vsel %vm317, %v1033, %v1034
          %v1037 = vadd.f32 %v1017, %v1035
          %s1038 = sld [smem:[#allocation5 + $0x13]]
          %v1039 = vstv %s1038
          %v1040 = vmul.f32 %v300, %v1039
          %1042 = vrot.lane.b32.xlu0 %v1040, 96
          %v1043 = vpop.permute.xlu0 %1042
          %v1044 = vrot.slane %v1043, 1
          %v1045 = vsel %vm338, %v1043, %v1044
          %v1047 = vadd.f32 %v1027, %v1045
          %s1048 = sld [smem:[#allocation5 + $0x44]]
          %v1049 = vstv %s1048
          %v1050 = vmul.f32 %v301, %v1049
          %1052 = vrot.lane.b32.xlu0 %v1050, 96
          %v1053 = vpop.permute.xlu0 %1052
          %v1054 = vrot.slane %v1053, 1
          %v1055 = vsel %vm338, %v1053, %v1054
          %v1057 = vadd.f32 %v1037, %v1055
          %s1058 = sld [smem:[#allocation5 + $0x1a]]
          %v1059 = vstv %s1058
          %v1060 = vmul.f32 %v300, %v1059
          %1062 = vrot.lane.b32.xlu0 %v1060, 80
          %v1063 = vpop.permute.xlu0 %1062
          %v1064 = vrot.slane %v1063, 1
          %v1065 = vsel %vm359, %v1063, %v1064
          %v1067 = vadd.f32 %v1047, %v1065
          %s1068 = sld [smem:[#allocation5 + $0x4b]]
          %v1069 = vstv %s1068
          %v1070 = vmul.f32 %v301, %v1069
          %1072 = vrot.lane.b32.xlu0 %v1070, 80
          %v1073 = vpop.permute.xlu0 %1072
          %v1074 = vrot.slane %v1073, 1
          %v1075 = vsel %vm359, %v1073, %v1074
          %v1077 = vadd.f32 %v1057, %v1075
          %s1078 = sld [smem:[#allocation5 + $0x21]]
          %v1079 = vstv %s1078
          %v1080 = vmul.f32 %v300, %v1079
          %1082 = vrot.lane.b32.xlu0 %v1080, 64
          %v1083 = vpop.permute.xlu0 %1082
          %v1084 = vrot.slane %v1083, 1
          %v1085 = vsel %vm380, %v1083, %v1084
          %v1087 = vadd.f32 %v1067, %v1085
          %s1088 = sld [smem:[#allocation5 + $0x52]]
          %v1089 = vstv %s1088
          %v1090 = vmul.f32 %v301, %v1089
          %1092 = vrot.lane.b32.xlu0 %v1090, 64
          %v1093 = vpop.permute.xlu0 %1092
          %v1094 = vrot.slane %v1093, 1
          %v1095 = vsel %vm380, %v1093, %v1094
          %v1097 = vadd.f32 %v1077, %v1095
          %s1098 = sld [smem:[#allocation5 + $0x28]]
          %v1099 = vstv %s1098
          %v1100 = vmul.f32 %v300, %v1099
          %1102 = vrot.lane.b32.xlu0 %v1100, 48
          %v1103 = vpop.permute.xlu0 %1102
          %v1104 = vrot.slane %v1103, 1
          %v1105 = vsel %vm401, %v1103, %v1104
          %v1107 = vadd.f32 %v1087, %v1105
          %s1108 = sld [smem:[#allocation5 + $0x59]]
          %v1109 = vstv %s1108
          %v1110 = vmul.f32 %v301, %v1109
          %1112 = vrot.lane.b32.xlu0 %v1110, 48
          %v1113 = vpop.permute.xlu0 %1112
          %v1114 = vrot.slane %v1113, 1
          %v1115 = vsel %vm401, %v1113, %v1114
          %v1117 = vadd.f32 %v1097, %v1115
          %s1118 = sld [smem:[#allocation5 + $0x2f]]
          %v1119 = vstv %s1118
          %v1120 = vmul.f32 %v300, %v1119
          %1122 = vrot.lane.b32.xlu0 %v1120, 32
          %v1123 = vpop.permute.xlu0 %1122
          %v1124 = vrot.slane %v1123, 1
          %v1125 = vsel %vm422, %v1123, %v1124
          %v1127 = vadd.f32 %v1107, %v1125
          %s1128 = sld [smem:[#allocation5 + $0x60]]
          %v1129 = vstv %s1128
          %v1130 = vmul.f32 %v301, %v1129
          %1132 = vrot.lane.b32.xlu0 %v1130, 32
          %v1133 = vpop.permute.xlu0 %1132
          %v1134 = vrot.slane %v1133, 1
          %v1135 = vsel %vm422, %v1133, %v1134
          %v1137 = vadd.f32 %v1117, %v1135
          %v1138 = vadd.f32 %v1127, %v1137
          %s1139 = scalar_lea.vmem [#allocation9], 5
          %v1140 = vld [vmem:[%s1139] ss:$8 sm:$0x3]
          %1142 = vrot.lane.b32.xlu0 %v1140, 5
          %v1143 = vpop.permute.xlu0 %1142
          %v1144 = vrot.slane %v1143, 7
          %vm1145 = vcmask 39936
          %v1146 = vsel %vm1145, %v1144, %v1143
          %v1148 = vmul.f32 %v1138, %v1146
          %1150 = vrot.lane.b32.xlu0 %v1148, 124
          %v1151 = vpop.permute.xlu0 %1150
          %v1152 = vrot.slane %v1151, 1
          %v1153 = vsel %vm1006, %v1151, %v1152
          %v1155 = vadd.f32 %v862, %v1153
          %s1156 = sld [smem:[#allocation5 + $0x6]]
          %v1157 = vstv %s1156
          %v1158 = vmul.f32 %v300, %v1157
          %v1159 = vadd.f32 %v1158, 0.0
          %s1160 = sld [smem:[#allocation5 + $0x37]]
          %v1161 = vstv %s1160
          %v1162 = vmul.f32 %v301, %v1161
          %v1163 = vadd.f32 %v1162, 0.0
          %s1164 = sld [smem:[#allocation5 + $0xd]]
          %v1165 = vstv %s1164
          %v1166 = vmul.f32 %v300, %v1165
          %1168 = vrot.lane.b32.xlu0 %v1166, 112
          %v1169 = vpop.permute.xlu0 %1168
          %v1170 = vrot.slane %v1169, 1
          %v1171 = vsel %vm317, %v1169, %v1170
          %v1173 = vadd.f32 %v1159, %v1171
          %s1174 = sld [smem:[#allocation5 + $0x3e]]
          %v1175 = vstv %s1174
          %v1176 = vmul.f32 %v301, %v1175
          %1178 = vrot.lane.b32.xlu0 %v1176, 112
          %v1179 = vpop.permute.xlu0 %1178
          %v1180 = vrot.slane %v1179, 1
          %v1181 = vsel %vm317, %v1179, %v1180
          %v1183 = vadd.f32 %v1163, %v1181
          %s1184 = sld [smem:[#allocation5 + $0x14]]
          %v1185 = vstv %s1184
          %v1186 = vmul.f32 %v300, %v1185
          %1188 = vrot.lane.b32.xlu0 %v1186, 96
          %v1189 = vpop.permute.xlu0 %1188
          %v1190 = vrot.slane %v1189, 1
          %v1191 = vsel %vm338, %v1189, %v1190
          %v1193 = vadd.f32 %v1173, %v1191
          %s1194 = sld [smem:[#allocation5 + $0x45]]
          %v1195 = vstv %s1194
          %v1196 = vmul.f32 %v301, %v1195
          %1198 = vrot.lane.b32.xlu0 %v1196, 96
          %v1199 = vpop.permute.xlu0 %1198
          %v1200 = vrot.slane %v1199, 1
          %v1201 = vsel %vm338, %v1199, %v1200
          %v1203 = vadd.f32 %v1183, %v1201
          %s1204 = sld [smem:[#allocation5 + $0x1b]]
          %v1205 = vstv %s1204
          %v1206 = vmul.f32 %v300, %v1205
          %1208 = vrot.lane.b32.xlu0 %v1206, 80
          %v1209 = vpop.permute.xlu0 %1208
          %v1210 = vrot.slane %v1209, 1
          %v1211 = vsel %vm359, %v1209, %v1210
          %v1213 = vadd.f32 %v1193, %v1211
          %s1214 = sld [smem:[#allocation5 + $0x4c]]
          %v1215 = vstv %s1214
          %v1216 = vmul.f32 %v301, %v1215
          %1218 = vrot.lane.b32.xlu0 %v1216, 80
          %v1219 = vpop.permute.xlu0 %1218
          %v1220 = vrot.slane %v1219, 1
          %v1221 = vsel %vm359, %v1219, %v1220
          %v1223 = vadd.f32 %v1203, %v1221
          %s1224 = sld [smem:[#allocation5 + $0x22]]
          %v1225 = vstv %s1224
          %v1226 = vmul.f32 %v300, %v1225
          %1228 = vrot.lane.b32.xlu0 %v1226, 64
          %v1229 = vpop.permute.xlu0 %1228
          %v1230 = vrot.slane %v1229, 1
          %v1231 = vsel %vm380, %v1229, %v1230
          %v1233 = vadd.f32 %v1213, %v1231
          %s1234 = sld [smem:[#allocation5 + $0x53]]
          %v1235 = vstv %s1234
          %v1236 = vmul.f32 %v301, %v1235
          %1238 = vrot.lane.b32.xlu0 %v1236, 64
          %v1239 = vpop.permute.xlu0 %1238
          %v1240 = vrot.slane %v1239, 1
          %v1241 = vsel %vm380, %v1239, %v1240
          %v1243 = vadd.f32 %v1223, %v1241
          %s1244 = sld [smem:[#allocation5 + $0x29]]
          %v1245 = vstv %s1244
          %v1246 = vmul.f32 %v300, %v1245
          %1248 = vrot.lane.b32.xlu0 %v1246, 48
          %v1249 = vpop.permute.xlu0 %1248
          %v1250 = vrot.slane %v1249, 1
          %v1251 = vsel %vm401, %v1249, %v1250
          %v1253 = vadd.f32 %v1233, %v1251
          %s1254 = sld [smem:[#allocation5 + $0x5a]]
          %v1255 = vstv %s1254
          %v1256 = vmul.f32 %v301, %v1255
          %1258 = vrot.lane.b32.xlu0 %v1256, 48
          %v1259 = vpop.permute.xlu0 %1258
          %v1260 = vrot.slane %v1259, 1
          %v1261 = vsel %vm401, %v1259, %v1260
          %v1263 = vadd.f32 %v1243, %v1261
          %s1264 = sld [smem:[#allocation5 + $0x30]]
          %v1265 = vstv %s1264
          %v1266 = vmul.f32 %v300, %v1265
          %1268 = vrot.lane.b32.xlu0 %v1266, 32
          %v1269 = vpop.permute.xlu0 %1268
          %v1270 = vrot.slane %v1269, 1
          %v1271 = vsel %vm422, %v1269, %v1270
          %v1273 = vadd.f32 %v1253, %v1271
          %s1274 = sld [smem:[#allocation5 + $0x61]]
          %v1275 = vstv %s1274
          %v1276 = vmul.f32 %v301, %v1275
          %1278 = vrot.lane.b32.xlu0 %v1276, 32
          %v1279 = vpop.permute.xlu0 %1278
          %v1280 = vrot.slane %v1279, 1
          %v1281 = vsel %vm422, %v1279, %v1280
          %v1283 = vadd.f32 %v1263, %v1281
          %v1284 = vadd.f32 %v1273, %v1283
          %s1285 = scalar_lea.vmem [#allocation9], 6
          %v1286 = vld [vmem:[%s1285] ss:$8 sm:$0x3]
          %1288 = vrot.lane.b32.xlu0 %v1286, 6
          %v1289 = vpop.permute.xlu0 %1288
          %v1290 = vrot.slane %v1289, 7
          %vm1291 = vcmask 48128
          %v1292 = vsel %vm1291, %v1290, %v1289
          %v1294 = vmul.f32 %v1284, %v1292
          %1296 = vrot.lane.b32.xlu0 %v1294, 122
          %v1297 = vpop.permute.xlu0 %1296
          %v1298 = vrot.slane %v1297, 1
          %vm1299 = vcmask 998400
          %v1300 = vsel %vm1299, %v1297, %v1298
          %v1302 = vadd.f32 %v1009, %v1300
          %1304 = vrot.lane.b32.xlu0 %v1155, 127
          %v1305 = vpop.permute.xlu0 %1304
          %v1306 = vrot.slane %v1305, 1
          %vm1307 = vcmask 1039360
          %v1308 = vsel %vm1307, %v1305, %v1306
          %v1310 = vadd.f32 %v1302, %v1308
          %v1311 = vxor.u32 %v1310, 2147483648
          %v1312 = vmul.f32 %v1311, 1.442695
          %v1313 = vpow.pop %v1312
          %v1314 = vadd.f32 %v1313, 1.0
          %v1315 = vrcp.pop %v1314
          %v1316 = vmul.f32 1.0, %v1315
          %vm1317 = vcmp.lt.s32.totalorder %v271, 256
          %vm1318 = vmand %vm272, %vm1317
          %1319 = vst.msk [vmem:[%s227] sm:$0x3] %vm1318, %v1316
        $region56: #{tpu_custom_call.1} parent=31 // pred_fallthru
          _
        %s1320 = sand.u32 %s112, 1
        %s1321 = scalar_lea.sflag [#allocation7], %s1320
        %s1322 = sand.u32 %s112, 1
        %s1323 = smul.addr %s1322, 2
        %s1324 = scalar_lea.vmem [#allocation12], %s1323
        // Predicated region
        $region57: #{tpu_custom_call.1} parent=31 // pred_check
          %p1325 = pneg %p122
        $region58: #{tpu_custom_call.1} parent=31 // pred_check_branch
          %1327 = sbr.rel (%p1325) target = $region60
        $region59: #{tpu_custom_call.1} parent=31 // pred_region
          %s1329 = ssub.s32 32, 32
          %1330 = vsyncadd %s1321, %s1329
          %s1331 = smul.addr %s26, 2
          %s1332 = smul.addr %s1331, 16
          %s1333 = scalar_lea.hbm %s3, %s1332
          %s1335 = sshll.u32 %s1324, 4
          %s1336 = int_to_ptr.vmem [resolvable:$true] %s1335
          %1338 = dma.vmem_to_hbm [thread:$0]  %s1336, 32, %s1333, %s1321
        $region60: #{tpu_custom_call.1} parent=31 // pred_fallthru
          _
      $region32: #{tpu_custom_call.1} parent=5 // pred_fallthru
        _
      %p1339 = scmp.le.s32.totalorder 2, %s17
      // Predicated region
      $region61: #{tpu_custom_call.1} parent=5 // pred_check
        %p1340 = pneg %p1339
      $region62: #{tpu_custom_call.1} parent=5 // pred_check_branch
        %1342 = sbr.rel (%p1340) target = $region64
      $region63: #{tpu_custom_call.1} parent=5 // pred_region
        %s1343 = ssub.s32 %s17, 2
        // Predicated region
        $region65: #{tpu_custom_call.1} parent=63 // pred_check
          %p1344 = pneg %p128
        $region66: #{tpu_custom_call.1} parent=63 // pred_check_branch
          %1346 = sbr.rel (%p1344) target = $region68
        $region67: #{tpu_custom_call.1} parent=63 // pred_region
          %s1347 = sand.u32 %s113, 1
          %s1348 = scalar_lea.sflag [#allocation7], %s1347
          %s1349 = sand.u32 %s113, 1
          %s1350 = smul.addr %s1349, 2
          %s1351 = scalar_lea.vmem [#allocation12], %s1350
          %1352 = dma.done %s1348, 32
        $region68: #{tpu_custom_call.1} parent=63 // pred_fallthru
          _
      $region64: #{tpu_custom_call.1} parent=5 // pred_fallthru
        _
    $region6: #{tpu_custom_call.1} parent=1 // loop_footer
      %s21 = sadd.s32 1, %s17
    $region7: #{tpu_custom_call.1} parent=1 // loop_footer_branch
      %16 = sbr.rel target = $region3
    $region8: #{tpu_custom_call.1} parent=1 // loop_exit
      _
    %1353 = vsyncpa [#allocation6], 1
    %s1354 = scalar_lea.sflag [#allocation6], 1
    %1355 = vsyncpa %s1354, 1
    %1356 = vsyncpa [#allocation11], 1
    %s1357 = scalar_lea.sflag [#allocation11], 1
    %1358 = vsyncpa %s1357, 1
    %1359 = vsyncpa [#allocation7], 1
    %s1360 = scalar_lea.sflag [#allocation7], 1
    %1361 = vsyncpa %s1360, 1
    %1362 = vsyncpa [#allocation8], 1
    %s1363 = scalar_lea.sflag [#allocation8], 1
    %1364 = vsyncpa %s1363, 1

</llo_original>
